<compile_context>
chip_gen: v5e
topology: v5e:2x2
jax: 0.10.0
libtpu: 0.0.40
codegen_flags: <defaults>
</compile_context>

<pallas_src>
import math
import numpy as np
import jax
import jax.numpy as jnp
from jax import lax
from jax.experimental import pallas as pl
from jax.experimental.pallas import tpu as pltpu


# ---------------------------------------------------------------------------
# Fused kernel: Attention + seq + dnet(stand-in) + Conv1d(2C->C) + input_proj
#               + cross-attention (transformer stand-in) -> stacked [Q ; Q_bar].
# Whole batch in one invocation; all intermediates live in VMEM.
# ---------------------------------------------------------------------------
def make_fused_kernel(B, HW, C, D, NC):
    scale = 1.0 / math.sqrt(D)
    f32 = jnp.float32
    bf16 = jnp.bfloat16
    BHW = B * HW

    def sigmoid(v):                      # exp + approx reciprocal both on EUP
        return pl.reciprocal(1.0 + jnp.exp(-v), approx=True)

    def kernel(x_ref, patches_ref, wconv_ref, bconv_ref, wgate_ref, bgate_ref,
               wd_ref, bd_ref, wc0_ref, wc1_ref, bcat_ref,
               wproj_ref, bproj_ref, ee_ref, out_ref):
        x3 = x_ref[...]                                   # (B, HW, C)  f32
        x = x3.reshape(BHW, C)                            # (BHW, C)
        patches = patches_ref[...].reshape(BHW, 9 * C)    # (BHW, 9C)   bf16

        # conv1x1 + conv3x3 fused into one im2col matmul (w1 folded into the
        # centre tap in the wrapper; bias = b1 + b3).  M = B*HW fills MXU rows.
        x12 = (jnp.dot(patches, wconv_ref[...], preferred_element_type=f32)
               + bconv_ref[...]).reshape(B, HW, C)

        # Global average pool per batch element, then ONE fused gate matmul
        # for the sse (Attention) and seq gates: wgate = [wsse | wseq] (C,2C).
        gap = jnp.mean(x3, axis=1)                        # (B, C)
        gate = sigmoid(jnp.dot(gap.astype(bf16), wgate_ref[...],
                               preferred_element_type=f32) + bgate_ref[...])
        sse = gate[:, :C][:, None, :]                     # (B, 1, C)
        s = gate[:, C:][:, None, :]                       # (B, 1, C)

        y_att = jnp.maximum(x12 + sse * x3, 0.0)          # Attention output
        src1 = (s + y_att).reshape(BHW, C)                # self.seq + att

        # TODO(synk): DModule (self.dnet) is undefined in the source file;
        # 1x1-conv stand-in over channels.
        src0 = jnp.dot(x.astype(bf16), wd_ref[...],
                       preferred_element_type=f32) + bd_ref[...]

        # Conv1d(2C -> C) without materialising the channel concat.
        srcn = (jnp.dot(src0.astype(bf16), wc0_ref[...],
                        preferred_element_type=f32)
                + jnp.dot(src1.astype(bf16), wc1_ref[...],
                          preferred_element_type=f32)
                + bcat_ref[...])

        # input_proj (Conv2d 1x1): (BHW, D); stays in VMEM, never hits HBM.
        feat = jnp.dot(srcn.astype(bf16), wproj_ref[...],
                       preferred_element_type=f32) + bproj_ref[...]
        feat3 = feat.astype(bf16).reshape(B, HW, D)

        # transformer stand-in: cross-attention of stacked [E ; E@Wk] against
        # feat, producing Q and Q_bar in one pass.  Per-batch 2-D dots (B is a
        # tiny static unroll); the rhs-contracted score dot is the canonical
        # flash-attention (trans_b) form, so no feat relayout is materialised.
        ee = ee_ref[...]                                  # (2*NC, D) bf16
        for b in range(B):                                # static unroll, B=2
            f_b = feat3[b]                                # (HW, D) bf16
            scores = lax.dot_general(
                ee, f_b, dimension_numbers=(((1,), (1,)), ((), ())),
                preferred_element_type=f32) * scale       # (2*NC, HW)
            m = jnp.max(scores, axis=-1, keepdims=True)
            e = jnp.exp(scores - m)
            # Exact softmax denominator (review: error budget at scale).
            probs = e / jnp.sum(e, axis=-1, keepdims=True)
            # NOTE: probs->bf16 before the value matmul matches the reference;
            # documented deviation from an f32 PyTorch original.
            out_ref[b] = jnp.dot(probs.astype(bf16), f_b,
                                 preferred_element_type=f32)   # (2*NC, D)

    return kernel


def fused_block(x, patches, kp, p):
    B, HW, C = x.shape
    D = p['wproj'].shape[1]
    NC = p['query_embed'].shape[0]
    bf = jnp.bfloat16
    kernel = make_fused_kernel(B, HW, C, D, NC)

    args = (
        x,
        patches.astype(bf),
        kp['wconv'].astype(bf), kp['bconv'],            # folded conv w / bias
        kp['wgate'].astype(bf), kp['bgate'],            # fused sse|seq gate
        p['wd'].astype(bf), p['bd'],                    # dnet stand-in
        kp['wcat0'].astype(bf), kp['wcat1'].astype(bf), p['bcat'],
        p['wproj'].astype(bf), p['bproj'],              # input_proj
        kp['ee'].astype(bf),                            # stacked [E ; E@Wk]
    )

    # Explicit VMEM budget: operands + output + f32 intermediates, 4x headroom,
    # clamped to stay inside every generation's physical VMEM (v7x: 64 MiB).
    operand_bytes = sum(int(np.prod(a.shape)) * a.dtype.itemsize for a in args)
    interm_bytes = B * HW * (9 * C + 6 * C + 2 * D) * 4
    out_bytes = B * 2 * NC * D * 4
    vmem_limit = int(min(64 * 1024 * 1024,
                         max(4 * 1024 * 1024,
                             4 * (operand_bytes + interm_bytes + out_bytes))))

    # Single invocation: whole (tiny) arrays land in VMEM; no grid / pipeline
    # overhead.  NOTE: the (2*NC, D) output slab is narrow (D=32 lanes) but
    # only ~8 KiB total, so masked stores are off the critical path here.
    return pl.pallas_call(
        kernel,
        out_shape=jax.ShapeDtypeStruct((B, 2 * NC, D), jnp.float32),
        compiler_params=pltpu.CompilerParams(vmem_limit_bytes=vmem_limit),
    )(*args)


# ---------------------------------------------------------------------------
# Wrapper-side prep (plain XLA, tiny): im2col, weight folding, query stacking.
# ---------------------------------------------------------------------------
def im2col_3x3(src_nhwc):
    # TODO(synk): at real scale (C=2048) replace with an in-kernel haloed
    # 9-tap accumulation; the patches tensor is 9x the activation HBM bytes.
    B, H, W, C = src_nhwc.shape
    xp = jnp.pad(src_nhwc, ((0, 0), (1, 1), (1, 1), (0, 0)))
    cols = [xp[:, dy:dy + H, dx:dx + W, :].reshape(B, H * W, C)
            for dy in range(3) for dx in range(3)]
    return jnp.concatenate(cols, axis=-1)          # (B, HW, 9*C)


def prepare_kernel_params(p):
    C = p['w1'].shape[0]
    hp = lax.Precision.HIGHEST
    # Fold the 1x1-conv weight into the centre im2col tap.  Only valid for the
    # dy-major tap ordering produced by im2col_3x3 (centre == tap index 4).
    wconv = p['w3'].reshape(9 * C, C)
    wconv = wconv.at[4 * C:5 * C, :].add(p['w1'])
    bconv = p['b1'] + p['b3']
    # Fused gate weight: one (C, 2C) MXU push instead of two M=1 dots.
    wgate = jnp.concatenate([p['wsse'], p['wseq']], axis=1)   # (C, 2C)
    bgate = jnp.concatenate([p['bsse'], p['bseq']], axis=1)   # (1, 2C)
    ee = jnp.concatenate(
        [p['query_embed'],
         jnp.matmul(p['query_embed'], p['wk'], precision=hp)], axis=0)
    return {'wconv': wconv, 'bconv': bconv, 'wgate': wgate, 'bgate': bgate,
            'wcat0': p['wcat'][:C], 'wcat1': p['wcat'][C:], 'ee': ee}


def _heads(Q, Qbar, Qbar_shuf, p):
    # GroupWiseLinear heads; nn.Dropout(p=0.35) treated as inference identity.
    z_x = jnp.sum(p['wfc'][None] * Q, -1) + p['bfc']
    z_c_cap = jnp.sum(p['wadd'][None] * (Qbar_shuf + Q), -1) + p['badd']
    z_c = jnp.sum(p['wconf'][None] * Qbar, -1) + p['bconf']
    return z_x, z_c_cap, z_c


@jax.jit
def causal_forward(x_nchw, p, perm):
    src = jnp.transpose(x_nchw, (0, 2, 3, 1)).astype(jnp.float32)  # NCHW->NHWC
    B, H, W, C = src.shape
    NC = p['query_embed'].shape[0]
    x = src.reshape(B, H * W, C)
    patches = im2col_3x3(src)
    kp = prepare_kernel_params(p)
    qq = fused_block(x, patches, kp, p)            # (B, 2*NC, D)
    Q, Qbar = qq[:, :NC], qq[:, NC:]
    Qbar_shuf = Qbar[perm]                         # random batch re-pairing
    return _heads(Q, Qbar, Qbar_shuf, p)


# ---------------------------------------------------------------------------
# Pure-JAX reference mirroring the kernel math (bf16 operands at dot
# boundaries, f32 accumulation; exact sigmoid/softmax).
# ---------------------------------------------------------------------------
def reference_forward(x_nchw, p, perm):
    f32 = jnp.float32
    bf = lambda a: a.astype(jnp.bfloat16)

    def mm(a, b):
        return jnp.matmul(bf(a), bf(b), preferred_element_type=f32)

    src = jnp.transpose(x_nchw, (0, 2, 3, 1)).astype(f32)
    B, H, W, C = src.shape
    D = p['wproj'].shape[1]
    NC = p['query_embed'].shape[0]
    x = src.reshape(B, H * W, C)
    patches = im2col_3x3(src)
    kp = prepare_kernel_params(p)

    x12 = mm(patches, kp['wconv']) + kp['bconv']
    gap = x.mean(axis=1, keepdims=True)
    sse = jax.nn.sigmoid(mm(gap, p['wsse']) + p['bsse'])
    y_att = jnp.maximum(x12 + sse * x, 0.0)
    s = jax.nn.sigmoid(mm(gap, p['wseq']) + p['bseq'])
    src1 = s + y_att
    src0 = mm(x, p['wd']) + p['bd']
    srcn = mm(src0, kp['wcat0']) + mm(src1, kp['wcat1']) + p['bcat']
    feat = mm(srcn, p['wproj']) + p['bproj']

    scale = 1.0 / math.sqrt(D)
    scores = jnp.einsum('nd,bkd->bnk', bf(kp['ee']), bf(feat),
                        preferred_element_type=f32) * scale
    probs = jax.nn.softmax(scores, axis=-1)
    QQ = jnp.einsum('bnk,bkd->bnd', bf(probs), bf(feat),
                    preferred_element_type=f32)
    Q, Qbar = QQ[:, :NC], QQ[:, NC:]
    return _heads(Q, Qbar, Qbar[perm], p)


def init_params(key, C, D, NC):
    ks = jax.random.split(key, 22)
    sc = 0.05

    def w(k, shape):
        return jax.random.normal(k, shape, jnp.float32) * sc

    return {
        'w1': w(ks[0], (C, C)),        'b1': w(ks[1], (1, C)),
        'w3': w(ks[2], (9, C, C)),     'b3': w(ks[3], (1, C)),
        'wsse': w(ks[4], (C, C)),      'bsse': w(ks[5], (1, C)),
        'wseq': w(ks[6], (C, C)),      'bseq': w(ks[7], (1, C)),
        'wd': w(ks[8], (C, C)),        'bd': w(ks[9], (1, C)),
        'wcat': w(ks[10], (2 * C, C)), 'bcat': w(ks[11], (1, C)),
        'wproj': w(ks[12], (C, D)),    'bproj': w(ks[13], (1, D)),
        'query_embed': w(ks[14], (NC, D)),
        'wk': w(ks[15], (D, D)),
        'wfc': w(ks[16], (NC, D)),     'bfc': w(ks[17], (1, NC)),
        'wadd': w(ks[18], (NC, D)),    'badd': w(ks[19], (1, NC)),
        'wconf': w(ks[20], (NC, D)),   'bconf': w(ks[21], (1, NC)),
    }


if __name__ == "__main__":
    # bs=2; backbone channels (stand-in for 2048) = 32; hidden_dim = 32;
    # num_class = 16; spatial hw = imgsize/16 -> 8.
    B, C, H, W = 2, 32, 8, 8
    D, NC = 32, 16
    key = jax.random.PRNGKey(0)
    kx, kp_, kperm = jax.random.split(key, 3)
    x = jax.random.normal(kx, (B, C, H, W), jnp.float32)   # backbone feature map
    params = init_params(kp_, C, D, NC)
    perm = jax.random.permutation(kperm, B)                # deterministic shuffle stand-in

    outs = jax.block_until_ready(causal_forward(x, params, perm))
    refs = reference_forward(x, params, perm)
    for o, r in zip(outs, refs):
        np.testing.assert_allclose(np.asarray(o), np.asarray(r),
                                   atol=1e-2, rtol=1e-2)
    print("KERNEL_OK")
</pallas_src>

<mosaic_0001>
module attributes {stable_mosaic.version = 11 : i64} {
  func.func @kernel(%arg0: memref<2x64x32xf32, #tpu.memory_space<vmem>>, %arg1: memref<2x64x288xbf16, #tpu.memory_space<vmem>>, %arg2: memref<288x32xbf16, #tpu.memory_space<vmem>>, %arg3: memref<1x32xf32, #tpu.memory_space<vmem>>, %arg4: memref<32x64xbf16, #tpu.memory_space<vmem>>, %arg5: memref<1x64xf32, #tpu.memory_space<vmem>>, %arg6: memref<32x32xbf16, #tpu.memory_space<vmem>>, %arg7: memref<1x32xf32, #tpu.memory_space<vmem>>, %arg8: memref<32x32xbf16, #tpu.memory_space<vmem>>, %arg9: memref<32x32xbf16, #tpu.memory_space<vmem>>, %arg10: memref<1x32xf32, #tpu.memory_space<vmem>>, %arg11: memref<32x32xbf16, #tpu.memory_space<vmem>>, %arg12: memref<1x32xf32, #tpu.memory_space<vmem>>, %arg13: memref<32x32xbf16, #tpu.memory_space<vmem>>, %arg14: memref<2x32x32xf32, #tpu.memory_space<vmem>>) attributes {dimension_semantics = [], scalar_prefetch = 0 : i64, scratch_operands = 0 : i64, tpu.core_type = #tpu.core_type<tc>} {
    %c0 = arith.constant 0 : index
    %c0_0 = arith.constant 0 : index
    %c0_1 = arith.constant 0 : index
    %0 = vector.load %arg0[%c0, %c0_0, %c0_1] : memref<2x64x32xf32, #tpu.memory_space<vmem>>, vector<2x64x32xf32>
    %1 = vector.shape_cast %0 : vector<2x64x32xf32> to vector<128x32xf32>
    %c0_2 = arith.constant 0 : index
    %c0_3 = arith.constant 0 : index
    %c0_4 = arith.constant 0 : index
    %2 = vector.load %arg1[%c0_2, %c0_3, %c0_4] : memref<2x64x288xbf16, #tpu.memory_space<vmem>>, vector<2x64x288xbf16>
    %3 = vector.shape_cast %2 : vector<2x64x288xbf16> to vector<128x288xbf16>
    %c0_5 = arith.constant 0 : index
    %c0_6 = arith.constant 0 : index
    %4 = vector.load %arg2[%c0_5, %c0_6] : memref<288x32xbf16, #tpu.memory_space<vmem>>, vector<288x32xbf16>
    %cst = arith.constant dense<0.000000e+00> : vector<128x32xf32>
    %5 = tpu.matmul %3, %4, %cst {dimension_numbers = #tpu.dot_dimension_numbers<[1], [0], [0], [1], [0, 0, 1, 1], [], []>} : vector<128x288xbf16>, vector<288x32xbf16>, vector<128x32xf32> -> vector<128x32xf32>
    %c0_7 = arith.constant 0 : index
    %c0_8 = arith.constant 0 : index
    %6 = vector.load %arg3[%c0_7, %c0_8] : memref<1x32xf32, #tpu.memory_space<vmem>>, vector<1x32xf32>
    %7 = vector.broadcast %6 : vector<1x32xf32> to vector<128x32xf32>
    %8 = arith.addf %5, %7 : vector<128x32xf32>
    %9 = vector.shape_cast %8 : vector<128x32xf32> to vector<2x64x32xf32>
    %cst_9 = arith.constant dense<0.000000e+00> : vector<2x32xf32>
    %10 = vector.multi_reduction <add>, %0, %cst_9 [1] : vector<2x64x32xf32> to vector<2x32xf32>
    %cst_10 = arith.constant 6.400000e+01 : f32
    %11 = vector.broadcast %cst_10 : f32 to vector<2x32xf32>
    %12 = arith.divf %10, %11 : vector<2x32xf32>
    %13 = arith.truncf %12 : vector<2x32xf32> to vector<2x32xbf16>
    %c0_11 = arith.constant 0 : index
    %c0_12 = arith.constant 0 : index
    %14 = vector.load %arg4[%c0_11, %c0_12] : memref<32x64xbf16, #tpu.memory_space<vmem>>, vector<32x64xbf16>
    %cst_13 = arith.constant dense<0.000000e+00> : vector<2x64xf32>
    %15 = tpu.matmul %13, %14, %cst_13 {dimension_numbers = #tpu.dot_dimension_numbers<[1], [0], [0], [1], [0, 0, 1, 1], [], []>} : vector<2x32xbf16>, vector<32x64xbf16>, vector<2x64xf32> -> vector<2x64xf32>
    %c0_14 = arith.constant 0 : index
    %c0_15 = arith.constant 0 : index
    %16 = vector.load %arg5[%c0_14, %c0_15] : memref<1x64xf32, #tpu.memory_space<vmem>>, vector<1x64xf32>
    %17 = vector.broadcast %16 : vector<1x64xf32> to vector<2x64xf32>
    %18 = arith.addf %15, %17 : vector<2x64xf32>
    %cst_16 = arith.constant 0.000000e+00 : f32
    %19 = vector.broadcast %cst_16 : f32 to vector<2x64xf32>
    %20 = arith.subf %19, %18 : vector<2x64xf32>
    %21 = math.exp %20 : vector<2x64xf32>
    %cst_17 = arith.constant 1.000000e+00 : f32
    %22 = vector.broadcast %cst_17 : f32 to vector<2x64xf32>
    %23 = arith.addf %22, %21 : vector<2x64xf32>
    %24 = tpu.reciprocal %23 {approx = true} : vector<2x64xf32> -> vector<2x64xf32>
    %25 = vector.extract_strided_slice %24 {offsets = [0, 0], sizes = [2, 32], strides = [1, 1]} : vector<2x64xf32> to vector<2x32xf32>
    %26 = vector.shape_cast %25 : vector<2x32xf32> to vector<2x1x32xf32>
    %27 = vector.extract_strided_slice %24 {offsets = [0, 32], sizes = [2, 32], strides = [1, 1]} : vector<2x64xf32> to vector<2x32xf32>
    %28 = vector.shape_cast %27 : vector<2x32xf32> to vector<2x1x32xf32>
    %29 = vector.broadcast %26 : vector<2x1x32xf32> to vector<2x64x32xf32>
    %30 = arith.mulf %29, %0 : vector<2x64x32xf32>
    %31 = arith.addf %9, %30 : vector<2x64x32xf32>
    %cst_18 = arith.constant 0.000000e+00 : f32
    %32 = vector.broadcast %cst_18 : f32 to vector<2x64x32xf32>
    %33 = arith.maximumf %31, %32 : vector<2x64x32xf32>
    %34 = vector.broadcast %28 : vector<2x1x32xf32> to vector<2x64x32xf32>
    %35 = arith.addf %34, %33 : vector<2x64x32xf32>
    %36 = vector.shape_cast %35 : vector<2x64x32xf32> to vector<128x32xf32>
    %37 = arith.truncf %1 : vector<128x32xf32> to vector<128x32xbf16>
    %c0_19 = arith.constant 0 : index
    %c0_20 = arith.constant 0 : index
    %38 = vector.load %arg6[%c0_19, %c0_20] : memref<32x32xbf16, #tpu.memory_space<vmem>>, vector<32x32xbf16>
    %cst_21 = arith.constant dense<0.000000e+00> : vector<128x32xf32>
    %39 = tpu.matmul %37, %38, %cst_21 {dimension_numbers = #tpu.dot_dimension_numbers<[1], [0], [0], [1], [0, 0, 1, 1], [], []>} : vector<128x32xbf16>, vector<32x32xbf16>, vector<128x32xf32> -> vector<128x32xf32>
    %c0_22 = arith.constant 0 : index
    %c0_23 = arith.constant 0 : index
    %40 = vector.load %arg7[%c0_22, %c0_23] : memref<1x32xf32, #tpu.memory_space<vmem>>, vector<1x32xf32>
    %41 = vector.broadcast %40 : vector<1x32xf32> to vector<128x32xf32>
    %42 = arith.addf %39, %41 : vector<128x32xf32>
    %43 = arith.truncf %42 : vector<128x32xf32> to vector<128x32xbf16>
    %c0_24 = arith.constant 0 : index
    %c0_25 = arith.constant 0 : index
    %44 = vector.load %arg8[%c0_24, %c0_25] : memref<32x32xbf16, #tpu.memory_space<vmem>>, vector<32x32xbf16>
    %cst_26 = arith.constant dense<0.000000e+00> : vector<128x32xf32>
    %45 = tpu.matmul %43, %44, %cst_26 {dimension_numbers = #tpu.dot_dimension_numbers<[1], [0], [0], [1], [0, 0, 1, 1], [], []>} : vector<128x32xbf16>, vector<32x32xbf16>, vector<128x32xf32> -> vector<128x32xf32>
    %46 = arith.truncf %36 : vector<128x32xf32> to vector<128x32xbf16>
    %c0_27 = arith.constant 0 : index
    %c0_28 = arith.constant 0 : index
    %47 = vector.load %arg9[%c0_27, %c0_28] : memref<32x32xbf16, #tpu.memory_space<vmem>>, vector<32x32xbf16>
    %cst_29 = arith.constant dense<0.000000e+00> : vector<128x32xf32>
    %48 = tpu.matmul %46, %47, %cst_29 {dimension_numbers = #tpu.dot_dimension_numbers<[1], [0], [0], [1], [0, 0, 1, 1], [], []>} : vector<128x32xbf16>, vector<32x32xbf16>, vector<128x32xf32> -> vector<128x32xf32>
    %49 = arith.addf %45, %48 : vector<128x32xf32>
    %c0_30 = arith.constant 0 : index
    %c0_31 = arith.constant 0 : index
    %50 = vector.load %arg10[%c0_30, %c0_31] : memref<1x32xf32, #tpu.memory_space<vmem>>, vector<1x32xf32>
    %51 = vector.broadcast %50 : vector<1x32xf32> to vector<128x32xf32>
    %52 = arith.addf %49, %51 : vector<128x32xf32>
    %53 = arith.truncf %52 : vector<128x32xf32> to vector<128x32xbf16>
    %c0_32 = arith.constant 0 : index
    %c0_33 = arith.constant 0 : index
    %54 = vector.load %arg11[%c0_32, %c0_33] : memref<32x32xbf16, #tpu.memory_space<vmem>>, vector<32x32xbf16>
    %cst_34 = arith.constant dense<0.000000e+00> : vector<128x32xf32>
    %55 = tpu.matmul %53, %54, %cst_34 {dimension_numbers = #tpu.dot_dimension_numbers<[1], [0], [0], [1], [0, 0, 1, 1], [], []>} : vector<128x32xbf16>, vector<32x32xbf16>, vector<128x32xf32> -> vector<128x32xf32>
    %c0_35 = arith.constant 0 : index
    %c0_36 = arith.constant 0 : index
    %56 = vector.load %arg12[%c0_35, %c0_36] : memref<1x32xf32, #tpu.memory_space<vmem>>, vector<1x32xf32>
    %57 = vector.broadcast %56 : vector<1x32xf32> to vector<128x32xf32>
    %58 = arith.addf %55, %57 : vector<128x32xf32>
    %59 = arith.truncf %58 : vector<128x32xf32> to vector<128x32xbf16>
    %60 = vector.shape_cast %59 : vector<128x32xbf16> to vector<2x64x32xbf16>
    %c0_37 = arith.constant 0 : index
    %c0_38 = arith.constant 0 : index
    %61 = vector.load %arg13[%c0_37, %c0_38] : memref<32x32xbf16, #tpu.memory_space<vmem>>, vector<32x32xbf16>
    %62 = vector.extract_strided_slice %60 {offsets = [0, 0, 0], sizes = [1, 64, 32], strides = [1, 1, 1]} : vector<2x64x32xbf16> to vector<1x64x32xbf16>
    %63 = vector.shape_cast %62 : vector<1x64x32xbf16> to vector<64x32xbf16>
    %cst_39 = arith.constant dense<0.000000e+00> : vector<32x64xf32>
    %64 = tpu.matmul %61, %63, %cst_39 {dimension_numbers = #tpu.dot_dimension_numbers<[1], [1], [0], [0], [0, 0, 1, 0], [], []>} : vector<32x32xbf16>, vector<64x32xbf16>, vector<32x64xf32> -> vector<32x64xf32>
    %cst_40 = arith.constant 0.176776692 : f32
    %65 = vector.broadcast %cst_40 : f32 to vector<32x64xf32>
    %66 = arith.mulf %64, %65 : vector<32x64xf32>
    %cst_41 = arith.constant dense<0xFF800000> : vector<32xf32>
    %67 = vector.multi_reduction <maximumf>, %66, %cst_41 [1] : vector<32x64xf32> to vector<32xf32>
    %68 = vector.shape_cast %67 : vector<32xf32> to vector<32x1xf32>
    %69 = vector.broadcast %68 : vector<32x1xf32> to vector<32x64xf32>
    %70 = arith.subf %66, %69 : vector<32x64xf32>
    %71 = math.exp %70 : vector<32x64xf32>
    %cst_42 = arith.constant dense<0.000000e+00> : vector<32xf32>
    %72 = vector.multi_reduction <add>, %71, %cst_42 [1] : vector<32x64xf32> to vector<32xf32>
    %73 = vector.shape_cast %72 : vector<32xf32> to vector<32x1xf32>
    %74 = vector.broadcast %73 : vector<32x1xf32> to vector<32x64xf32>
    %75 = arith.divf %71, %74 : vector<32x64xf32>
    %76 = arith.truncf %75 : vector<32x64xf32> to vector<32x64xbf16>
    %cst_43 = arith.constant dense<0.000000e+00> : vector<32x32xf32>
    %77 = tpu.matmul %76, %63, %cst_43 {dimension_numbers = #tpu.dot_dimension_numbers<[1], [0], [0], [1], [0, 0, 1, 1], [], []>} : vector<32x64xbf16>, vector<64x32xbf16>, vector<32x32xf32> -> vector<32x32xf32>
    %c0_44 = arith.constant 0 : index
    %c0_45 = arith.constant 0 : index
    %c0_46 = arith.constant 0 : index
    %78 = vector.load %arg14[%c0_44, %c0_45, %c0_46] : memref<2x32x32xf32, #tpu.memory_space<vmem>>, vector<1x32x32xf32>
    %79 = vector.shape_cast %78 : vector<1x32x32xf32> to vector<32x32xf32>
    %80 = vector.shape_cast %77 : vector<32x32xf32> to vector<1x32x32xf32>
    tpu.vector_store %arg14[%c0_44, %c0_45, %c0_46], %80 {strides = array<i32>} : memref<2x32x32xf32, #tpu.memory_space<vmem>>, vector<1x32x32xf32>,
    %81 = vector.extract_strided_slice %60 {offsets = [1, 0, 0], sizes = [1, 64, 32], strides = [1, 1, 1]} : vector<2x64x32xbf16> to vector<1x64x32xbf16>
    %82 = vector.shape_cast %81 : vector<1x64x32xbf16> to vector<64x32xbf16>
    %cst_47 = arith.constant dense<0.000000e+00> : vector<32x64xf32>
    %83 = tpu.matmul %61, %82, %cst_47 {dimension_numbers = #tpu.dot_dimension_numbers<[1], [1], [0], [0], [0, 0, 1, 0], [], []>} : vector<32x32xbf16>, vector<64x32xbf16>, vector<32x64xf32> -> vector<32x64xf32>
    %cst_48 = arith.constant 0.176776692 : f32
    %84 = vector.broadcast %cst_48 : f32 to vector<32x64xf32>
    %85 = arith.mulf %83, %84 : vector<32x64xf32>
    %cst_49 = arith.constant dense<0xFF800000> : vector<32xf32>
    %86 = vector.multi_reduction <maximumf>, %85, %cst_49 [1] : vector<32x64xf32> to vector<32xf32>
    %87 = vector.shape_cast %86 : vector<32xf32> to vector<32x1xf32>
    %88 = vector.broadcast %87 : vector<32x1xf32> to vector<32x64xf32>
    %89 = arith.subf %85, %88 : vector<32x64xf32>
    %90 = math.exp %89 : vector<32x64xf32>
    %cst_50 = arith.constant dense<0.000000e+00> : vector<32xf32>
    %91 = vector.multi_reduction <add>, %90, %cst_50 [1] : vector<32x64xf32> to vector<32xf32>
    %92 = vector.shape_cast %91 : vector<32xf32> to vector<32x1xf32>
    %93 = vector.broadcast %92 : vector<32x1xf32> to vector<32x64xf32>
    %94 = arith.divf %90, %93 : vector<32x64xf32>
    %95 = arith.truncf %94 : vector<32x64xf32> to vector<32x64xbf16>
    %cst_51 = arith.constant dense<0.000000e+00> : vector<32x32xf32>
    %96 = tpu.matmul %95, %82, %cst_51 {dimension_numbers = #tpu.dot_dimension_numbers<[1], [0], [0], [1], [0, 0, 1, 1], [], []>} : vector<32x64xbf16>, vector<64x32xbf16>, vector<32x32xf32> -> vector<32x32xf32>
    %c1 = arith.constant 1 : index
    %c0_52 = arith.constant 0 : index
    %c0_53 = arith.constant 0 : index
    %97 = vector.load %arg14[%c1, %c0_52, %c0_53] : memref<2x32x32xf32, #tpu.memory_space<vmem>>, vector<1x32x32xf32>
    %98 = vector.shape_cast %97 : vector<1x32x32xf32> to vector<32x32xf32>
    %99 = vector.shape_cast %96 : vector<32x32xf32> to vector<1x32x32xf32>
    tpu.vector_store %arg14[%c1, %c0_52, %c0_53], %99 {strides = array<i32>} : memref<2x32x32xf32, #tpu.memory_space<vmem>>, vector<1x32x32xf32>,
    return
  }
}

</mosaic_0001>

<llo_original>
// kernel: causal_forward.1
$region0: #{causal_forward.1}
  #allocation0 [shape = 'u32[]', space=smem, size = 0x4, offset = 0x4, fixed_abs, tag = 'smem constant byte address 0x4 - core index']
  #allocation1 [shape = 'u32[72,128]{1,0:T(1,128)}', space=vmem, size = 0x9000, scoped, tag = 'internal scratch']
  %s0 = inlined_call_operand.vmem [shape: f32[2,64,32], index: 0, kind: input, shape index: {}]
  %s1 = inlined_call_operand.vmem [shape: bf16[2,64,288], index: 1, kind: input, shape index: {}]
  %s2 = inlined_call_operand.vmem [shape: bf16[288,32], index: 2, kind: input, shape index: {}]
  %s3 = inlined_call_operand.vmem [shape: f32[1,32], index: 3, kind: input, shape index: {}]
  %s4 = inlined_call_operand.vmem [shape: bf16[32,64], index: 4, kind: input, shape index: {}]
  %s5 = inlined_call_operand.vmem [shape: f32[1,64], index: 5, kind: input, shape index: {}]
  %s6 = inlined_call_operand.vmem [shape: bf16[32,32], index: 6, kind: input, shape index: {}]
  %s7 = inlined_call_operand.vmem [shape: f32[1,32], index: 7, kind: input, shape index: {}]
  %s8 = inlined_call_operand.vmem [shape: bf16[32,32], index: 8, kind: input, shape index: {}]
  %s9 = inlined_call_operand.vmem [shape: bf16[32,32], index: 9, kind: input, shape index: {}]
  %s10 = inlined_call_operand.vmem [shape: f32[1,32], index: 10, kind: input, shape index: {}]
  %s11 = inlined_call_operand.vmem [shape: bf16[32,32], index: 11, kind: input, shape index: {}]
  %s12 = inlined_call_operand.vmem [shape: f32[1,32], index: 12, kind: input, shape index: {}]
  %s13 = inlined_call_operand.vmem [shape: bf16[32,32], index: 13, kind: input, shape index: {}]
  %s14 = inlined_call_operand.vmem [shape: f32[2,32,32], index: 14, kind: output, shape index: {}]
  %s15 = sld [smem:[#allocation0]]
  $region66: #{causal_forward.1} parent=0
    _
  %s17 = ssub.s32 1, %s15
  %s18 = scalar_select 0, %s17, %s15
  // Predicated region
  $region2: #{causal_forward.1} parent=0 // pred_check
    _
  $region3: #{causal_forward.1} parent=0 // pred_check_branch
    %20 = sbr.rel (0) target = $region5
  $region4: #{causal_forward.1} parent=0 // pred_region
    _
  $region5: #{causal_forward.1} parent=0 // pred_fallthru
    _
  // Predicated region
  $region6: #{causal_forward.1} parent=0 // pred_check
    _
  $region7: #{causal_forward.1} parent=0 // pred_check_branch
    %22 = sbr.rel (0) target = $region9
  $region8: #{causal_forward.1} parent=0 // pred_region
    _
  $region9: #{causal_forward.1} parent=0 // pred_fallthru
    _
  // Predicated region
  $region10: #{causal_forward.1} parent=0 // pred_check
    _
  $region11: #{causal_forward.1} parent=0 // pred_check_branch
    %24 = sbr.rel (0) target = $region13
  $region12: #{causal_forward.1} parent=0 // pred_region
    _
  $region13: #{causal_forward.1} parent=0 // pred_fallthru
    _
  // Predicated region
  $region14: #{causal_forward.1} parent=0 // pred_check
    _
  $region15: #{causal_forward.1} parent=0 // pred_check_branch
    %26 = sbr.rel (0) target = $region17
  $region16: #{causal_forward.1} parent=0 // pred_region
    _
  $region17: #{causal_forward.1} parent=0 // pred_fallthru
    _
  // Predicated region
  $region18: #{causal_forward.1} parent=0 // pred_check
    _
  $region19: #{causal_forward.1} parent=0 // pred_check_branch
    %28 = sbr.rel (0) target = $region21
  $region20: #{causal_forward.1} parent=0 // pred_region
    _
  $region21: #{causal_forward.1} parent=0 // pred_fallthru
    _
  // Predicated region
  $region22: #{causal_forward.1} parent=0 // pred_check
    _
  $region23: #{causal_forward.1} parent=0 // pred_check_branch
    %30 = sbr.rel (0) target = $region25
  $region24: #{causal_forward.1} parent=0 // pred_region
    _
  $region25: #{causal_forward.1} parent=0 // pred_fallthru
    _
  // Predicated region
  $region26: #{causal_forward.1} parent=0 // pred_check
    _
  $region27: #{causal_forward.1} parent=0 // pred_check_branch
    %32 = sbr.rel (0) target = $region29
  $region28: #{causal_forward.1} parent=0 // pred_region
    _
  $region29: #{causal_forward.1} parent=0 // pred_fallthru
    _
  // Predicated region
  $region30: #{causal_forward.1} parent=0 // pred_check
    _
  $region31: #{causal_forward.1} parent=0 // pred_check_branch
    %34 = sbr.rel (0) target = $region33
  $region32: #{causal_forward.1} parent=0 // pred_region
    _
  $region33: #{causal_forward.1} parent=0 // pred_fallthru
    _
  // Predicated region
  $region34: #{causal_forward.1} parent=0 // pred_check
    _
  $region35: #{causal_forward.1} parent=0 // pred_check_branch
    %36 = sbr.rel (0) target = $region37
  $region36: #{causal_forward.1} parent=0 // pred_region
    _
  $region37: #{causal_forward.1} parent=0 // pred_fallthru
    _
  // Predicated region
  $region38: #{causal_forward.1} parent=0 // pred_check
    _
  $region39: #{causal_forward.1} parent=0 // pred_check_branch
    %38 = sbr.rel (0) target = $region41
  $region40: #{causal_forward.1} parent=0 // pred_region
    _
  $region41: #{causal_forward.1} parent=0 // pred_fallthru
    _
  // Predicated region
  $region42: #{causal_forward.1} parent=0 // pred_check
    _
  $region43: #{causal_forward.1} parent=0 // pred_check_branch
    %40 = sbr.rel (0) target = $region45
  $region44: #{causal_forward.1} parent=0 // pred_region
    _
  $region45: #{causal_forward.1} parent=0 // pred_fallthru
    _
  // Predicated region
  $region46: #{causal_forward.1} parent=0 // pred_check
    _
  $region47: #{causal_forward.1} parent=0 // pred_check_branch
    %42 = sbr.rel (0) target = $region49
  $region48: #{causal_forward.1} parent=0 // pred_region
    _
  $region49: #{causal_forward.1} parent=0 // pred_fallthru
    _
  // Predicated region
  $region50: #{causal_forward.1} parent=0 // pred_check
    _
  $region51: #{causal_forward.1} parent=0 // pred_check_branch
    %44 = sbr.rel (0) target = $region53
  $region52: #{causal_forward.1} parent=0 // pred_region
    _
  $region53: #{causal_forward.1} parent=0 // pred_fallthru
    _
  // Predicated region
  $region54: #{causal_forward.1} parent=0 // pred_check
    _
  $region55: #{causal_forward.1} parent=0 // pred_check_branch
    %46 = sbr.rel (0) target = $region57
  $region56: #{causal_forward.1} parent=0 // pred_region
    _
  $region57: #{causal_forward.1} parent=0 // pred_fallthru
    _
  %v48 = vld [vmem:[%s0] sm:$0xff]
  %v49 = vld [vmem:[%s0 + $0x8] sm:$0xff]
  %v50 = vld [vmem:[%s0 + $0x10] sm:$0xff]
  %v51 = vld [vmem:[%s0 + $0x18] sm:$0xff]
  %v52 = vld [vmem:[%s0 + $0x20] sm:$0xff]
  %v53 = vld [vmem:[%s0 + $0x28] sm:$0xff]
  %v54 = vld [vmem:[%s0 + $0x30] sm:$0xff]
  %v55 = vld [vmem:[%s0 + $0x38] sm:$0xff]
  %v56 = vld [vmem:[%s0 + $0x40] sm:$0xff]
  %v57 = vld [vmem:[%s0 + $0x48] sm:$0xff]
  %v58 = vld [vmem:[%s0 + $0x50] sm:$0xff]
  %v59 = vld [vmem:[%s0 + $0x58] sm:$0xff]
  %v60 = vld [vmem:[%s0 + $0x60] sm:$0xff]
  %v61 = vld [vmem:[%s0 + $0x68] sm:$0xff]
  %v62 = vld [vmem:[%s0 + $0x70] sm:$0xff]
  %v63 = vld [vmem:[%s0 + $0x78] sm:$0xff]
  %v64 = vld [vmem:[%s1] sm:$0xff]
  %v65 = vld [vmem:[%s1 + $0x8] sm:$0xf]
  %v66 = vld [vmem:[%s1 + $0xc] sm:$0xff]
  %v67 = vld [vmem:[%s1 + $0x14] sm:$0xf]
  %v68 = vld [vmem:[%s1 + $0x18] sm:$0xff]
  %v69 = vld [vmem:[%s1 + $0x20] sm:$0xf]
  %v70 = vld [vmem:[%s1 + $0x24] sm:$0xff]
  %v71 = vld [vmem:[%s1 + $0x2c] sm:$0xf]
  %v72 = vld [vmem:[%s1 + $0x30] sm:$0xff]
  %v73 = vld [vmem:[%s1 + $0x38] sm:$0xf]
  %v74 = vld [vmem:[%s1 + $0x3c] sm:$0xff]
  %v75 = vld [vmem:[%s1 + $0x44] sm:$0xf]
  %v76 = vld [vmem:[%s1 + $0x48] sm:$0xff]
  %v77 = vld [vmem:[%s1 + $0x50] sm:$0xf]
  %v78 = vld [vmem:[%s1 + $0x54] sm:$0xff]
  %v79 = vld [vmem:[%s1 + $0x5c] sm:$0xf]
  %v80 = vld [vmem:[%s1 + $0x60] sm:$0xff]
  %v81 = vld [vmem:[%s1 + $0x68] sm:$0xf]
  %v82 = vld [vmem:[%s1 + $0x6c] sm:$0xff]
  %v83 = vld [vmem:[%s1 + $0x74] sm:$0xf]
  %v84 = vld [vmem:[%s1 + $0x78] sm:$0xff]
  %v85 = vld [vmem:[%s1 + $0x80] sm:$0xf]
  %v86 = vld [vmem:[%s1 + $0x84] sm:$0xff]
  %v87 = vld [vmem:[%s1 + $0x8c] sm:$0xf]
  %v88 = vld [vmem:[%s1 + $0x90] sm:$0xff]
  %v89 = vld [vmem:[%s1 + $0x98] sm:$0xf]
  %v90 = vld [vmem:[%s1 + $0x9c] sm:$0xff]
  %v91 = vld [vmem:[%s1 + $0xa4] sm:$0xf]
  %v92 = vld [vmem:[%s1 + $0xa8] sm:$0xff]
  %v93 = vld [vmem:[%s1 + $0xb0] sm:$0xf]
  %v94 = vld [vmem:[%s1 + $0xb4] sm:$0xff]
  %v95 = vld [vmem:[%s1 + $0xbc] sm:$0xf]
  %v96 = vld [vmem:[%s2] sm:$0xf]
  %v97 = vld [vmem:[%s2 + $0x4] sm:$0xf]
  %v98 = vld [vmem:[%s2 + $0x8] sm:$0xf]
  %v99 = vld [vmem:[%s2 + $0xc] sm:$0xf]
  %v100 = vld [vmem:[%s2 + $0x10] sm:$0xf]
  %v101 = vld [vmem:[%s2 + $0x14] sm:$0xf]
  %v102 = vld [vmem:[%s2 + $0x18] sm:$0xf]
  %v103 = vld [vmem:[%s2 + $0x1c] sm:$0xf]
  %v104 = vld [vmem:[%s2 + $0x20] sm:$0xf]
  %v105 = vld [vmem:[%s2 + $0x24] sm:$0xf]
  %v106 = vld [vmem:[%s2 + $0x28] sm:$0xf]
  %v107 = vld [vmem:[%s2 + $0x2c] sm:$0xf]
  %v108 = vld [vmem:[%s2 + $0x30] sm:$0xf]
  %v109 = vld [vmem:[%s2 + $0x34] sm:$0xf]
  %v110 = vld [vmem:[%s2 + $0x38] sm:$0xf]
  %v111 = vld [vmem:[%s2 + $0x3c] sm:$0xf]
  %v112 = vld [vmem:[%s2 + $0x40] sm:$0xf]
  %v113 = vld [vmem:[%s2 + $0x44] sm:$0xf]
  %v114 = vld [vmem:[%s2 + $0x48] sm:$0xf]
  %v115 = vld [vmem:[%s2 + $0x4c] sm:$0xf]
  %v116 = vld [vmem:[%s2 + $0x50] sm:$0xf]
  %v117 = vld [vmem:[%s2 + $0x54] sm:$0xf]
  %v118 = vld [vmem:[%s2 + $0x58] sm:$0xf]
  %v119 = vld [vmem:[%s2 + $0x5c] sm:$0xf]
  %v120 = vld [vmem:[%s2 + $0x60] sm:$0xf]
  %v121 = vld [vmem:[%s2 + $0x64] sm:$0xf]
  %v122 = vld [vmem:[%s2 + $0x68] sm:$0xf]
  %v123 = vld [vmem:[%s2 + $0x6c] sm:$0xf]
  %v124 = vld [vmem:[%s2 + $0x70] sm:$0xf]
  %v125 = vld [vmem:[%s2 + $0x74] sm:$0xf]
  %v126 = vld [vmem:[%s2 + $0x78] sm:$0xf]
  %v127 = vld [vmem:[%s2 + $0x7c] sm:$0xf]
  %v128 = vld [vmem:[%s2 + $0x80] sm:$0xf]
  %v129 = vld [vmem:[%s2 + $0x84] sm:$0xf]
  %v130 = vld [vmem:[%s2 + $0x88] sm:$0xf]
  %v131 = vld [vmem:[%s2 + $0x8c] sm:$0xf]
  %v132 = vld [vmem:[%s3] sm:$0x1]
  %v134 = vperm.slane %v132, 0
  %v168 = vunpack.c.l.b16 %v64
  %v169 = vunpack.c.h.b16 %v64
  %v170 = vunpack.c.l.b16 %v65
  %v171 = vunpack.c.l.b16 %v66
  %v172 = vunpack.c.h.b16 %v66
  %v173 = vunpack.c.l.b16 %v67
  %v174 = vunpack.c.l.b16 %v68
  %v175 = vunpack.c.h.b16 %v68
  %v176 = vunpack.c.l.b16 %v69
  %v177 = vunpack.c.l.b16 %v70
  %v178 = vunpack.c.h.b16 %v70
  %v179 = vunpack.c.l.b16 %v71
  %v180 = vunpack.c.l.b16 %v72
  %v181 = vunpack.c.h.b16 %v72
  %v182 = vunpack.c.l.b16 %v73
  %v183 = vunpack.c.l.b16 %v74
  %v184 = vunpack.c.h.b16 %v74
  %v185 = vunpack.c.l.b16 %v75
  %v186 = vunpack.c.l.b16 %v76
  %v187 = vunpack.c.h.b16 %v76
  %v188 = vunpack.c.l.b16 %v77
  %v189 = vunpack.c.l.b16 %v78
  %v190 = vunpack.c.h.b16 %v78
  %v191 = vunpack.c.l.b16 %v79
  %v192 = vunpack.c.l.b16 %v80
  %v193 = vunpack.c.h.b16 %v80
  %v194 = vunpack.c.l.b16 %v81
  %v195 = vunpack.c.l.b16 %v82
  %v196 = vunpack.c.h.b16 %v82
  %v197 = vunpack.c.l.b16 %v83
  %v198 = vunpack.c.l.b16 %v84
  %v199 = vunpack.c.h.b16 %v84
  %v200 = vunpack.c.l.b16 %v85
  %v201 = vunpack.c.l.b16 %v86
  %v202 = vunpack.c.h.b16 %v86
  %v203 = vunpack.c.l.b16 %v87
  %v204 = vunpack.c.l.b16 %v88
  %v205 = vunpack.c.h.b16 %v88
  %v206 = vunpack.c.l.b16 %v89
  %v207 = vunpack.c.l.b16 %v90
  %v208 = vunpack.c.h.b16 %v90
  %v209 = vunpack.c.l.b16 %v91
  %v210 = vunpack.c.l.b16 %v92
  %v211 = vunpack.c.h.b16 %v92
  %v212 = vunpack.c.l.b16 %v93
  %v213 = vunpack.c.l.b16 %v94
  %v214 = vunpack.c.h.b16 %v94
  %v215 = vunpack.c.l.b16 %v95
  %v216 = vpack.c.b16 %v171, %v168
  %v217 = vpack.c.b16 %v172, %v169
  %v218 = vpack.c.b16 %v173, %v170
  %v219 = vpack.c.b16 %v177, %v174
  %v220 = vpack.c.b16 %v178, %v175
  %v221 = vpack.c.b16 %v179, %v176
  %v222 = vpack.c.b16 %v183, %v180
  %v223 = vpack.c.b16 %v184, %v181
  %v224 = vpack.c.b16 %v185, %v182
  %v225 = vpack.c.b16 %v189, %v186
  %v226 = vpack.c.b16 %v190, %v187
  %v227 = vpack.c.b16 %v191, %v188
  %v228 = vpack.c.b16 %v195, %v192
  %v229 = vpack.c.b16 %v196, %v193
  %v230 = vpack.c.b16 %v197, %v194
  %v231 = vpack.c.b16 %v201, %v198
  %v232 = vpack.c.b16 %v202, %v199
  %v233 = vpack.c.b16 %v203, %v200
  %v234 = vpack.c.b16 %v207, %v204
  %v235 = vpack.c.b16 %v208, %v205
  %v236 = vpack.c.b16 %v209, %v206
  %v237 = vpack.c.b16 %v213, %v210
  %v238 = vpack.c.b16 %v214, %v211
  %v239 = vpack.c.b16 %v215, %v212
  %v292 = vunpack.c.l.b16 %v96
  %v293 = vunpack.c.l.b16 %v97
  %v294 = vunpack.c.l.b16 %v98
  %v295 = vunpack.c.l.b16 %v99
  %v296 = vunpack.c.l.b16 %v100
  %v297 = vunpack.c.l.b16 %v101
  %v298 = vunpack.c.l.b16 %v102
  %v299 = vunpack.c.l.b16 %v103
  %v300 = vunpack.c.l.b16 %v104
  %v301 = vunpack.c.l.b16 %v105
  %v302 = vunpack.c.l.b16 %v106
  %v303 = vunpack.c.l.b16 %v107
  %v304 = vunpack.c.l.b16 %v108
  %v305 = vunpack.c.l.b16 %v109
  %v306 = vunpack.c.l.b16 %v110
  %v307 = vunpack.c.l.b16 %v111
  %v308 = vunpack.c.l.b16 %v112
  %v309 = vunpack.c.l.b16 %v113
  %v310 = vunpack.c.l.b16 %v114
  %v311 = vunpack.c.l.b16 %v115
  %v312 = vunpack.c.l.b16 %v116
  %v313 = vunpack.c.l.b16 %v117
  %v314 = vunpack.c.l.b16 %v118
  %v315 = vunpack.c.l.b16 %v119
  %v316 = vunpack.c.l.b16 %v120
  %v317 = vunpack.c.l.b16 %v121
  %v318 = vunpack.c.l.b16 %v122
  %v319 = vunpack.c.l.b16 %v123
  %v320 = vunpack.c.l.b16 %v124
  %v321 = vunpack.c.l.b16 %v125
  %v322 = vunpack.c.l.b16 %v126
  %v323 = vunpack.c.l.b16 %v127
  %v324 = vunpack.c.l.b16 %v128
  %v325 = vunpack.c.l.b16 %v129
  %v326 = vunpack.c.l.b16 %v130
  %v327 = vunpack.c.l.b16 %v131
  %v328 = vpack.c.b16 %v293, %v292
  %v329 = vpack.c.b16 %v295, %v294
  %v330 = vpack.c.b16 %v297, %v296
  %v331 = vpack.c.b16 %v299, %v298
  %v332 = vpack.c.b16 %v301, %v300
  %v333 = vpack.c.b16 %v303, %v302
  %v334 = vpack.c.b16 %v305, %v304
  %v335 = vpack.c.b16 %v307, %v306
  %v336 = vpack.c.b16 %v309, %v308
  %v337 = vpack.c.b16 %v311, %v310
  %v338 = vpack.c.b16 %v313, %v312
  %v339 = vpack.c.b16 %v315, %v314
  %v340 = vpack.c.b16 %v317, %v316
  %v341 = vpack.c.b16 %v319, %v318
  %v342 = vpack.c.b16 %v321, %v320
  %v343 = vpack.c.b16 %v323, %v322
  %v344 = vpack.c.b16 %v325, %v324
  %v345 = vpack.c.b16 %v327, %v326
  %vm364 = vcmask 261120
  %v366 = vsel %vm364, %v218, 0
  %v369 = vsel %vm364, %v221, 0
  %v372 = vsel %vm364, %v224, 0
  %v375 = vsel %vm364, %v227, 0
  %v378 = vsel %vm364, %v230, 0
  %v381 = vsel %vm364, %v233, 0
  %v384 = vsel %vm364, %v236, 0
  %v387 = vsel %vm364, %v239, 0
  %389 = vmatpush.bf16.msra.mxu0 %v335
  %390 = vmatpush.bf16.msra.mxu0 %v334
  %391 = vmatpush.bf16.msra.mxu0 %v333
  %392 = vmatpush.bf16.msra.mxu0 %v332
  %393 = vmatpush.bf16.msra.mxu0 %v331
  %394 = vmatpush.bf16.msra.mxu0 %v330
  %395 = vmatpush.bf16.msra.mxu0 %v329
  %396 = vmatpush.bf16.msra.mxu0 %v328
  %397 = vmatmul.bf16.gmra.mxu0 %v216
  %v398 = vpop.f32.mrf.mxu0
  %v399 = vadd.f32 %v134, %v398
  %v400 = vpop.f32.mrf.mxu0
  %v401 = vadd.f32 %v134, %v400
  %402 = vmatmul.bf16.gmra.mxu0 %v219
  %v403 = vpop.f32.mrf.mxu0
  %v404 = vadd.f32 %v134, %v403
  %v405 = vpop.f32.mrf.mxu0
  %v406 = vadd.f32 %v134, %v405
  %407 = vmatmul.bf16.gmra.mxu0 %v222
  %v408 = vpop.f32.mrf.mxu0
  %v409 = vadd.f32 %v134, %v408
  %v410 = vpop.f32.mrf.mxu0
  %v411 = vadd.f32 %v134, %v410
  %412 = vmatmul.bf16.gmra.mxu0 %v225
  %v413 = vpop.f32.mrf.mxu0
  %v414 = vadd.f32 %v134, %v413
  %v415 = vpop.f32.mrf.mxu0
  %v416 = vadd.f32 %v134, %v415
  %417 = vmatmul.bf16.gmra.mxu0 %v228
  %v418 = vpop.f32.mrf.mxu0
  %v419 = vadd.f32 %v134, %v418
  %v420 = vpop.f32.mrf.mxu0
  %v421 = vadd.f32 %v134, %v420
  %422 = vmatmul.bf16.gmra.mxu0 %v231
  %v423 = vpop.f32.mrf.mxu0
  %v424 = vadd.f32 %v134, %v423
  %v425 = vpop.f32.mrf.mxu0
  %v426 = vadd.f32 %v134, %v425
  %427 = vmatmul.bf16.gmra.mxu0 %v234
  %v428 = vpop.f32.mrf.mxu0
  %v429 = vadd.f32 %v134, %v428
  %v430 = vpop.f32.mrf.mxu0
  %v431 = vadd.f32 %v134, %v430
  %432 = vmatmul.bf16.gmra.mxu0 %v237
  %v433 = vpop.f32.mrf.mxu0
  %v434 = vadd.f32 %v134, %v433
  %v435 = vpop.f32.mrf.mxu0
  %v436 = vadd.f32 %v134, %v435
  %437 = vdwg.mxu0
  %438 = vmatpush.bf16.msra.mxu0 %v343
  %439 = vmatpush.bf16.msra.mxu0 %v342
  %440 = vmatpush.bf16.msra.mxu0 %v341
  %441 = vmatpush.bf16.msra.mxu0 %v340
  %442 = vmatpush.bf16.msra.mxu0 %v339
  %443 = vmatpush.bf16.msra.mxu0 %v338
  %444 = vmatpush.bf16.msra.mxu0 %v337
  %445 = vmatpush.bf16.msra.mxu0 %v336
  %446 = vmatmul.bf16.gmra.mxu0 %v217
  %v447 = vpop.f32.mrf.mxu0
  %v448 = vadd.f32 %v399, %v447
  %v449 = vpop.f32.mrf.mxu0
  %v450 = vadd.f32 %v401, %v449
  %451 = vmatmul.bf16.gmra.mxu0 %v220
  %v452 = vpop.f32.mrf.mxu0
  %v453 = vadd.f32 %v404, %v452
  %v454 = vpop.f32.mrf.mxu0
  %v455 = vadd.f32 %v406, %v454
  %456 = vmatmul.bf16.gmra.mxu0 %v223
  %v457 = vpop.f32.mrf.mxu0
  %v458 = vadd.f32 %v409, %v457
  %v459 = vpop.f32.mrf.mxu0
  %v460 = vadd.f32 %v411, %v459
  %461 = vmatmul.bf16.gmra.mxu0 %v226
  %v462 = vpop.f32.mrf.mxu0
  %v463 = vadd.f32 %v414, %v462
  %v464 = vpop.f32.mrf.mxu0
  %v465 = vadd.f32 %v416, %v464
  %466 = vmatmul.bf16.gmra.mxu0 %v229
  %v467 = vpop.f32.mrf.mxu0
  %v468 = vadd.f32 %v419, %v467
  %v469 = vpop.f32.mrf.mxu0
  %v470 = vadd.f32 %v421, %v469
  %471 = vmatmul.bf16.gmra.mxu0 %v232
  %v472 = vpop.f32.mrf.mxu0
  %v473 = vadd.f32 %v424, %v472
  %v474 = vpop.f32.mrf.mxu0
  %v475 = vadd.f32 %v426, %v474
  %476 = vmatmul.bf16.gmra.mxu0 %v235
  %v477 = vpop.f32.mrf.mxu0
  %v478 = vadd.f32 %v429, %v477
  %v479 = vpop.f32.mrf.mxu0
  %v480 = vadd.f32 %v431, %v479
  %481 = vmatmul.bf16.gmra.mxu0 %v238
  %v482 = vpop.f32.mrf.mxu0
  %v483 = vadd.f32 %v434, %v482
  %v484 = vpop.f32.mrf.mxu0
  %v485 = vadd.f32 %v436, %v484
  %486 = vdwg.mxu0
  %487 = vmatpush.bf16.msra.mxu0 0
  %488 = vmatpush.bf16.msra.mxu0 0
  %489 = vmatpush.bf16.msra.mxu0 0
  %490 = vmatpush.bf16.msra.mxu0 0
  %491 = vmatpush.bf16.msra.mxu0 0
  %492 = vmatpush.bf16.msra.mxu0 0
  %493 = vmatpush.bf16.msra.mxu0 %v345
  %494 = vmatpush.bf16.msra.mxu0 %v344
  %495 = vmatmul.bf16.gmra.mxu0 %v366
  %v496 = vpop.f32.mrf.mxu0
  %v497 = vadd.f32 %v448, %v496
  %v498 = vpop.f32.mrf.mxu0
  %v499 = vadd.f32 %v450, %v498
  %500 = vmatmul.bf16.gmra.mxu0 %v369
  %v501 = vpop.f32.mrf.mxu0
  %v502 = vadd.f32 %v453, %v501
  %v503 = vpop.f32.mrf.mxu0
  %v504 = vadd.f32 %v455, %v503
  %505 = vmatmul.bf16.gmra.mxu0 %v372
  %v506 = vpop.f32.mrf.mxu0
  %v507 = vadd.f32 %v458, %v506
  %v508 = vpop.f32.mrf.mxu0
  %v509 = vadd.f32 %v460, %v508
  %510 = vmatmul.bf16.gmra.mxu0 %v375
  %v511 = vpop.f32.mrf.mxu0
  %v512 = vadd.f32 %v463, %v511
  %v513 = vpop.f32.mrf.mxu0
  %v514 = vadd.f32 %v465, %v513
  %515 = vmatmul.bf16.gmra.mxu0 %v378
  %v516 = vpop.f32.mrf.mxu0
  %v517 = vadd.f32 %v468, %v516
  %v518 = vpop.f32.mrf.mxu0
  %v519 = vadd.f32 %v470, %v518
  %520 = vmatmul.bf16.gmra.mxu0 %v381
  %v521 = vpop.f32.mrf.mxu0
  %v522 = vadd.f32 %v473, %v521
  %v523 = vpop.f32.mrf.mxu0
  %v524 = vadd.f32 %v475, %v523
  %525 = vmatmul.bf16.gmra.mxu0 %v384
  %v526 = vpop.f32.mrf.mxu0
  %v527 = vadd.f32 %v478, %v526
  %v528 = vpop.f32.mrf.mxu0
  %v529 = vadd.f32 %v480, %v528
  %530 = vmatmul.bf16.gmra.mxu0 %v387
  %v531 = vpop.f32.mrf.mxu0
  %v532 = vadd.f32 %v483, %v531
  %v533 = vpop.f32.mrf.mxu0
  %v534 = vadd.f32 %v485, %v533
  %535 = vdwg.mxu0
  %v536 = vsel %vm364, %v48, 0.0
  %v537 = vsel %vm364, %v49, 0.0
  %v538 = vadd.f32 %v536, %v537
  %v539 = vsel %vm364, %v50, 0.0
  %v540 = vadd.f32 %v538, %v539
  %v541 = vsel %vm364, %v51, 0.0
  %v542 = vadd.f32 %v540, %v541
  %v543 = vsel %vm364, %v52, 0.0
  %v544 = vadd.f32 %v542, %v543
  %v545 = vsel %vm364, %v53, 0.0
  %v546 = vadd.f32 %v544, %v545
  %v547 = vsel %vm364, %v54, 0.0
  %v548 = vadd.f32 %v546, %v547
  %v549 = vsel %vm364, %v55, 0.0
  %v550 = vadd.f32 %v548, %v549
  %v551 = vrot.slane %v550, 4
  %v552 = vadd.f32 %v550, %v551
  %v553 = vrot.slane %v552, 2
  %v554 = vadd.f32 %v552, %v553
  %v555 = vrot.slane %v554, 1
  %v556 = vadd.f32 %v554, %v555
  %v557 = vsel %vm364, %v56, 0.0
  %v558 = vsel %vm364, %v57, 0.0
  %v559 = vadd.f32 %v557, %v558
  %v560 = vsel %vm364, %v58, 0.0
  %v561 = vadd.f32 %v559, %v560
  %v562 = vsel %vm364, %v59, 0.0
  %v563 = vadd.f32 %v561, %v562
  %v564 = vsel %vm364, %v60, 0.0
  %v565 = vadd.f32 %v563, %v564
  %v566 = vsel %vm364, %v61, 0.0
  %v567 = vadd.f32 %v565, %v566
  %v568 = vsel %vm364, %v62, 0.0
  %v569 = vadd.f32 %v567, %v568
  %v570 = vsel %vm364, %v63, 0.0
  %v571 = vadd.f32 %v569, %v570
  %v572 = vrot.slane %v571, 4
  %v573 = vadd.f32 %v571, %v572
  %v574 = vrot.slane %v573, 2
  %v575 = vadd.f32 %v573, %v574
  %v576 = vrot.slane %v575, 1
  %v577 = vadd.f32 %v575, %v576
  %v578 = vrcp.pop 64.0
  %v579 = vmul.f32 64.0, %v578
  %v580 = vsub.f32 1.0, %v579
  %v581 = vmul.f32 %v578, %v580
  %v582 = vadd.f32 %v578, %v581
  %vm583 = vweird.f32 %v578
  %v584 = vsel %vm583, %v578, %v582
  %v585 = vmul.f32 %v556, %v584
  %v586 = vmul.f32 %v577, %v584
  %v587 = vpack.c.bf16 %v585, %v585
  %v588 = vpack.c.bf16 %v586, %v586
  %v589 = vld [vmem:[%s4] sm:$0xf]
  %v590 = vld [vmem:[%s4 + $0x4] sm:$0xf]
  %v591 = vld [vmem:[%s4 + $0x8] sm:$0xf]
  %v592 = vld [vmem:[%s4 + $0xc] sm:$0xf]
  %v593 = vld [vmem:[%s5] sm:$0x1]
  %v595 = vperm.slane %v593, 0
  %v599 = vunpack.c.l.b16 %v587
  %v600 = vunpack.c.l.b16 %v588
  %vm601 = vcmask 1041409
  %v602 = vsel %vm601, %v600, %v599
  %v603 = vpack.c.b16 %v602, %v602
  %v608 = vunpack.c.l.b16 %v589
  %v609 = vunpack.c.l.b16 %v590
  %v610 = vunpack.c.l.b16 %v591
  %v611 = vunpack.c.l.b16 %v592
  %v612 = vpack.c.b16 %v609, %v608
  %v613 = vpack.c.b16 %v611, %v610
  %v617 = vsel %vm364, %v603, 0
  %619 = vmatpush.bf16.msra.mxu0 0
  %620 = vmatpush.bf16.msra.mxu0 0
  %621 = vmatpush.bf16.msra.mxu0 0
  %622 = vmatpush.bf16.msra.mxu0 0
  %623 = vmatpush.bf16.msra.mxu0 0
  %624 = vmatpush.bf16.msra.mxu0 0
  %625 = vmatpush.bf16.msra.mxu0 %v613
  %626 = vmatpush.bf16.msra.mxu0 %v612
  %627 = vmatmul.bf16.gmra.mxu0 %v617
  %v628 = vpop.f32.mrf.mxu0
  %v629 = vadd.f32 %v595, %v628
  %v630 = vpop.f32.mrf.mxu0
  %631 = vdwg.mxu0
  %v632 = vsub.f32 0.0, %v629
  %v633 = vmul.f32 %v632, 1.442695
  %v634 = vpow.pop %v633
  %v635 = vadd.f32 %v634, 1.0
  %v636 = vrcp.pop %v635
  %v638 = vrot.slane %v636, 1
  %v639 = vperm.slane %v636, 0
  %v640 = vperm.slane %v638, 0
  %v643 = vmul.f32 %v639, %v48
  %v644 = vmul.f32 %v639, %v49
  %v645 = vmul.f32 %v639, %v50
  %v646 = vmul.f32 %v639, %v51
  %v647 = vmul.f32 %v639, %v52
  %v648 = vmul.f32 %v639, %v53
  %v649 = vmul.f32 %v639, %v54
  %v650 = vmul.f32 %v639, %v55
  %v651 = vmul.f32 %v640, %v56
  %v652 = vmul.f32 %v640, %v57
  %v653 = vmul.f32 %v640, %v58
  %v654 = vmul.f32 %v640, %v59
  %v655 = vmul.f32 %v640, %v60
  %v656 = vmul.f32 %v640, %v61
  %v657 = vmul.f32 %v640, %v62
  %v658 = vmul.f32 %v640, %v63
  %v659 = vadd.f32 %v497, %v643
  %v660 = vadd.f32 %v499, %v644
  %v661 = vadd.f32 %v502, %v645
  %v662 = vadd.f32 %v504, %v646
  %v663 = vadd.f32 %v507, %v647
  %v664 = vadd.f32 %v509, %v648
  %v665 = vadd.f32 %v512, %v649
  %v666 = vadd.f32 %v514, %v650
  %v667 = vadd.f32 %v517, %v651
  %v668 = vadd.f32 %v519, %v652
  %v669 = vadd.f32 %v522, %v653
  %v670 = vadd.f32 %v524, %v654
  %v671 = vadd.f32 %v527, %v655
  %v672 = vadd.f32 %v529, %v656
  %v673 = vadd.f32 %v532, %v657
  %v674 = vadd.f32 %v534, %v658
  %v675 = vmax.f32 %v659, 0.0
  %v676 = vmax.f32 %v660, 0.0
  %v677 = vmax.f32 %v661, 0.0
  %v678 = vmax.f32 %v662, 0.0
  %v679 = vmax.f32 %v663, 0.0
  %v680 = vmax.f32 %v664, 0.0
  %v681 = vmax.f32 %v665, 0.0
  %v682 = vmax.f32 %v666, 0.0
  %v683 = vmax.f32 %v667, 0.0
  %v684 = vmax.f32 %v668, 0.0
  %v685 = vmax.f32 %v669, 0.0
  %v686 = vmax.f32 %v670, 0.0
  %v687 = vmax.f32 %v671, 0.0
  %v688 = vmax.f32 %v672, 0.0
  %v689 = vmax.f32 %v673, 0.0
  %v690 = vmax.f32 %v674, 0.0
  %707 = vrot.lane.b32.xlu0 %v675, 32
  %v708 = vpop.permute.xlu0 %707
  %709 = vrot.lane.b32.xlu0 %v676, 32
  %v710 = vpop.permute.xlu0 %709
  %711 = vrot.lane.b32.xlu0 %v677, 32
  %v712 = vpop.permute.xlu0 %711
  %713 = vrot.lane.b32.xlu0 %v678, 32
  %v714 = vpop.permute.xlu0 %713
  %715 = vrot.lane.b32.xlu0 %v679, 32
  %v716 = vpop.permute.xlu0 %715
  %717 = vrot.lane.b32.xlu0 %v680, 32
  %v718 = vpop.permute.xlu0 %717
  %719 = vrot.lane.b32.xlu0 %v681, 32
  %v720 = vpop.permute.xlu0 %719
  %721 = vrot.lane.b32.xlu0 %v682, 32
  %v722 = vpop.permute.xlu0 %721
  %723 = vrot.lane.b32.xlu0 %v683, 32
  %v724 = vpop.permute.xlu0 %723
  %725 = vrot.lane.b32.xlu0 %v684, 32
  %v726 = vpop.permute.xlu0 %725
  %727 = vrot.lane.b32.xlu0 %v685, 32
  %v728 = vpop.permute.xlu0 %727
  %729 = vrot.lane.b32.xlu0 %v686, 32
  %v730 = vpop.permute.xlu0 %729
  %731 = vrot.lane.b32.xlu0 %v687, 32
  %v732 = vpop.permute.xlu0 %731
  %733 = vrot.lane.b32.xlu0 %v688, 32
  %v734 = vpop.permute.xlu0 %733
  %735 = vrot.lane.b32.xlu0 %v689, 32
  %v736 = vpop.permute.xlu0 %735
  %737 = vrot.lane.b32.xlu0 %v690, 32
  %v738 = vpop.permute.xlu0 %737
  %v755 = vadd.f32 %v639, %v708
  %v756 = vadd.f32 %v639, %v710
  %v757 = vadd.f32 %v639, %v712
  %v758 = vadd.f32 %v639, %v714
  %v759 = vadd.f32 %v639, %v716
  %v760 = vadd.f32 %v639, %v718
  %v761 = vadd.f32 %v639, %v720
  %v762 = vadd.f32 %v639, %v722
  %v763 = vadd.f32 %v640, %v724
  %v764 = vadd.f32 %v640, %v726
  %v765 = vadd.f32 %v640, %v728
  %v766 = vadd.f32 %v640, %v730
  %v767 = vadd.f32 %v640, %v732
  %v768 = vadd.f32 %v640, %v734
  %v769 = vadd.f32 %v640, %v736
  %v770 = vadd.f32 %v640, %v738
  %v771 = vpack.c.bf16 %v49, %v48
  %v772 = vpack.c.bf16 %v51, %v50
  %v773 = vpack.c.bf16 %v53, %v52
  %v774 = vpack.c.bf16 %v55, %v54
  %v775 = vpack.c.bf16 %v57, %v56
  %v776 = vpack.c.bf16 %v59, %v58
  %v777 = vpack.c.bf16 %v61, %v60
  %v778 = vpack.c.bf16 %v63, %v62
  %v779 = vld [vmem:[%s6] sm:$0xf]
  %v780 = vld [vmem:[%s6 + $0x4] sm:$0xf]
  %v781 = vld [vmem:[%s6 + $0x8] sm:$0xf]
  %v782 = vld [vmem:[%s6 + $0xc] sm:$0xf]
  %v783 = vld [vmem:[%s7] sm:$0x1]
  %v785 = vperm.slane %v783, 0
  %v791 = vunpack.c.l.b16 %v779
  %v792 = vunpack.c.l.b16 %v780
  %v793 = vunpack.c.l.b16 %v781
  %v794 = vunpack.c.l.b16 %v782
  %v795 = vpack.c.b16 %v792, %v791
  %v796 = vpack.c.b16 %v794, %v793
  %v800 = vsel %vm364, %v771, 0
  %v803 = vsel %vm364, %v772, 0
  %v806 = vsel %vm364, %v773, 0
  %v809 = vsel %vm364, %v774, 0
  %v812 = vsel %vm364, %v775, 0
  %v815 = vsel %vm364, %v776, 0
  %v818 = vsel %vm364, %v777, 0
  %v821 = vsel %vm364, %v778, 0
  %823 = vmatpush.bf16.msra.mxu0 0
  %824 = vmatpush.bf16.msra.mxu0 0
  %825 = vmatpush.bf16.msra.mxu0 0
  %826 = vmatpush.bf16.msra.mxu0 0
  %827 = vmatpush.bf16.msra.mxu0 0
  %828 = vmatpush.bf16.msra.mxu0 0
  %829 = vmatpush.bf16.msra.mxu0 %v796
  %830 = vmatpush.bf16.msra.mxu0 %v795
  %831 = vmatmul.bf16.gmra.mxu0 %v800
  %v832 = vpop.f32.mrf.mxu0
  %v833 = vadd.f32 %v785, %v832
  %v834 = vpop.f32.mrf.mxu0
  %v835 = vadd.f32 %v785, %v834
  %836 = vmatmul.bf16.gmra.mxu0 %v803
  %v837 = vpop.f32.mrf.mxu0
  %v838 = vadd.f32 %v785, %v837
  %v839 = vpop.f32.mrf.mxu0
  %v840 = vadd.f32 %v785, %v839
  %841 = vmatmul.bf16.gmra.mxu0 %v806
  %v842 = vpop.f32.mrf.mxu0
  %v843 = vadd.f32 %v785, %v842
  %v844 = vpop.f32.mrf.mxu0
  %v845 = vadd.f32 %v785, %v844
  %846 = vmatmul.bf16.gmra.mxu0 %v809
  %v847 = vpop.f32.mrf.mxu0
  %v848 = vadd.f32 %v785, %v847
  %v849 = vpop.f32.mrf.mxu0
  %v850 = vadd.f32 %v785, %v849
  %851 = vmatmul.bf16.gmra.mxu0 %v812
  %v852 = vpop.f32.mrf.mxu0
  %v853 = vadd.f32 %v785, %v852
  %v854 = vpop.f32.mrf.mxu0
  %v855 = vadd.f32 %v785, %v854
  %856 = vmatmul.bf16.gmra.mxu0 %v815
  %v857 = vpop.f32.mrf.mxu0
  %v858 = vadd.f32 %v785, %v857
  %v859 = vpop.f32.mrf.mxu0
  %v860 = vadd.f32 %v785, %v859
  %861 = vmatmul.bf16.gmra.mxu0 %v818
  %v862 = vpop.f32.mrf.mxu0
  %v863 = vadd.f32 %v785, %v862
  %v864 = vpop.f32.mrf.mxu0
  %v865 = vadd.f32 %v785, %v864
  %866 = vmatmul.bf16.gmra.mxu0 %v821
  %v867 = vpop.f32.mrf.mxu0
  %v868 = vadd.f32 %v785, %v867
  %v869 = vpop.f32.mrf.mxu0
  %v870 = vadd.f32 %v785, %v869
  %871 = vdwg.mxu0
  %v872 = vpack.c.bf16 %v835, %v833
  %v873 = vpack.c.bf16 %v840, %v838
  %v874 = vpack.c.bf16 %v845, %v843
  %v875 = vpack.c.bf16 %v850, %v848
  %v876 = vpack.c.bf16 %v855, %v853
  %v877 = vpack.c.bf16 %v860, %v858
  %v878 = vpack.c.bf16 %v865, %v863
  %v879 = vpack.c.bf16 %v870, %v868
  %v880 = vld [vmem:[%s8] sm:$0xf]
  %v881 = vld [vmem:[%s8 + $0x4] sm:$0xf]
  %v882 = vld [vmem:[%s8 + $0x8] sm:$0xf]
  %v883 = vld [vmem:[%s8 + $0xc] sm:$0xf]
  %v884 = vpack.c.bf16 %v756, %v755
  %v885 = vpack.c.bf16 %v758, %v757
  %v886 = vpack.c.bf16 %v760, %v759
  %v887 = vpack.c.bf16 %v762, %v761
  %v888 = vpack.c.bf16 %v764, %v763
  %v889 = vpack.c.bf16 %v766, %v765
  %v890 = vpack.c.bf16 %v768, %v767
  %v891 = vpack.c.bf16 %v770, %v769
  %v892 = vld [vmem:[%s9] sm:$0xf]
  %v893 = vld [vmem:[%s9 + $0x4] sm:$0xf]
  %v894 = vld [vmem:[%s9 + $0x8] sm:$0xf]
  %v895 = vld [vmem:[%s9 + $0xc] sm:$0xf]
  %904 = vrot.lane.b32.xlu0 %v884, 96
  %v905 = vpop.permute.xlu0 %904
  %906 = vrot.lane.b32.xlu0 %v885, 96
  %v907 = vpop.permute.xlu0 %906
  %908 = vrot.lane.b32.xlu0 %v886, 96
  %v909 = vpop.permute.xlu0 %908
  %910 = vrot.lane.b32.xlu0 %v887, 96
  %v911 = vpop.permute.xlu0 %910
  %912 = vrot.lane.b32.xlu0 %v888, 96
  %v913 = vpop.permute.xlu0 %912
  %914 = vrot.lane.b32.xlu0 %v889, 96
  %v915 = vpop.permute.xlu0 %914
  %916 = vrot.lane.b32.xlu0 %v890, 96
  %v917 = vpop.permute.xlu0 %916
  %918 = vrot.lane.b32.xlu0 %v891, 96
  %v919 = vpop.permute.xlu0 %918
  %v924 = vunpack.c.l.b16 %v892
  %v925 = vunpack.c.l.b16 %v893
  %v926 = vunpack.c.l.b16 %v894
  %v927 = vunpack.c.l.b16 %v895
  %v928 = vpack.c.b16 %v925, %v924
  %v929 = vpack.c.b16 %v927, %v926
  %v933 = vsel %vm364, %v905, 0
  %v936 = vsel %vm364, %v907, 0
  %v939 = vsel %vm364, %v909, 0
  %v942 = vsel %vm364, %v911, 0
  %v945 = vsel %vm364, %v913, 0
  %v948 = vsel %vm364, %v915, 0
  %v951 = vsel %vm364, %v917, 0
  %v954 = vsel %vm364, %v919, 0
  %956 = vmatpush.bf16.msra.mxu0 0
  %957 = vmatpush.bf16.msra.mxu0 0
  %958 = vmatpush.bf16.msra.mxu0 0
  %959 = vmatpush.bf16.msra.mxu0 0
  %960 = vmatpush.bf16.msra.mxu0 0
  %961 = vmatpush.bf16.msra.mxu0 0
  %962 = vmatpush.bf16.msra.mxu0 %v929
  %963 = vmatpush.bf16.msra.mxu0 %v928
  %964 = vmatmul.bf16.gmra.mxu0 %v933
  %v965 = vpop.f32.mrf.mxu0
  %v966 = vadd.f32 0.0, %v965
  %v967 = vpop.f32.mrf.mxu0
  %v968 = vadd.f32 0.0, %v967
  %969 = vmatmul.bf16.gmra.mxu0 %v936
  %v970 = vpop.f32.mrf.mxu0
  %v971 = vadd.f32 0.0, %v970
  %v972 = vpop.f32.mrf.mxu0
  %v973 = vadd.f32 0.0, %v972
  %974 = vmatmul.bf16.gmra.mxu0 %v939
  %v975 = vpop.f32.mrf.mxu0
  %v976 = vadd.f32 0.0, %v975
  %v977 = vpop.f32.mrf.mxu0
  %v978 = vadd.f32 0.0, %v977
  %979 = vmatmul.bf16.gmra.mxu0 %v942
  %v980 = vpop.f32.mrf.mxu0
  %v981 = vadd.f32 0.0, %v980
  %v982 = vpop.f32.mrf.mxu0
  %v983 = vadd.f32 0.0, %v982
  %984 = vmatmul.bf16.gmra.mxu0 %v945
  %v985 = vpop.f32.mrf.mxu0
  %v986 = vadd.f32 0.0, %v985
  %v987 = vpop.f32.mrf.mxu0
  %v988 = vadd.f32 0.0, %v987
  %989 = vmatmul.bf16.gmra.mxu0 %v948
  %v990 = vpop.f32.mrf.mxu0
  %v991 = vadd.f32 0.0, %v990
  %v992 = vpop.f32.mrf.mxu0
  %v993 = vadd.f32 0.0, %v992
  %994 = vmatmul.bf16.gmra.mxu0 %v951
  %v995 = vpop.f32.mrf.mxu0
  %v996 = vadd.f32 0.0, %v995
  %v997 = vpop.f32.mrf.mxu0
  %v998 = vadd.f32 0.0, %v997
  %999 = vmatmul.bf16.gmra.mxu0 %v954
  %v1000 = vpop.f32.mrf.mxu0
  %v1001 = vadd.f32 0.0, %v1000
  %v1002 = vpop.f32.mrf.mxu0
  %v1003 = vadd.f32 0.0, %v1002
  %1004 = vdwg.mxu0
  %v1009 = vunpack.c.l.b16 %v880
  %v1010 = vunpack.c.l.b16 %v881
  %v1011 = vunpack.c.l.b16 %v882
  %v1012 = vunpack.c.l.b16 %v883
  %v1013 = vpack.c.b16 %v1010, %v1009
  %v1014 = vpack.c.b16 %v1012, %v1011
  %v1018 = vsel %vm364, %v872, 0
  %v1021 = vsel %vm364, %v873, 0
  %v1024 = vsel %vm364, %v874, 0
  %v1027 = vsel %vm364, %v875, 0
  %v1030 = vsel %vm364, %v876, 0
  %v1033 = vsel %vm364, %v877, 0
  %v1036 = vsel %vm364, %v878, 0
  %v1039 = vsel %vm364, %v879, 0
  %1041 = vmatpush.bf16.msra.mxu0 0
  %1042 = vmatpush.bf16.msra.mxu0 0
  %1043 = vmatpush.bf16.msra.mxu0 0
  %1044 = vmatpush.bf16.msra.mxu0 0
  %1045 = vmatpush.bf16.msra.mxu0 0
  %1046 = vmatpush.bf16.msra.mxu0 0
  %1047 = vmatpush.bf16.msra.mxu0 %v1014
  %1048 = vmatpush.bf16.msra.mxu0 %v1013
  %1049 = vmatmul.bf16.gmra.mxu0 %v1018
  %v1050 = vpop.f32.mrf.mxu0
  %v1051 = vadd.f32 %v966, %v1050
  %v1052 = vpop.f32.mrf.mxu0
  %v1053 = vadd.f32 %v968, %v1052
  %1054 = vmatmul.bf16.gmra.mxu0 %v1021
  %v1055 = vpop.f32.mrf.mxu0
  %v1056 = vadd.f32 %v971, %v1055
  %v1057 = vpop.f32.mrf.mxu0
  %v1058 = vadd.f32 %v973, %v1057
  %1059 = vmatmul.bf16.gmra.mxu0 %v1024
  %v1060 = vpop.f32.mrf.mxu0
  %v1061 = vadd.f32 %v976, %v1060
  %v1062 = vpop.f32.mrf.mxu0
  %v1063 = vadd.f32 %v978, %v1062
  %1064 = vmatmul.bf16.gmra.mxu0 %v1027
  %v1065 = vpop.f32.mrf.mxu0
  %v1066 = vadd.f32 %v981, %v1065
  %v1067 = vpop.f32.mrf.mxu0
  %v1068 = vadd.f32 %v983, %v1067
  %1069 = vmatmul.bf16.gmra.mxu0 %v1030
  %v1070 = vpop.f32.mrf.mxu0
  %v1071 = vadd.f32 %v986, %v1070
  %v1072 = vpop.f32.mrf.mxu0
  %v1073 = vadd.f32 %v988, %v1072
  %1074 = vmatmul.bf16.gmra.mxu0 %v1033
  %v1075 = vpop.f32.mrf.mxu0
  %v1076 = vadd.f32 %v991, %v1075
  %v1077 = vpop.f32.mrf.mxu0
  %v1078 = vadd.f32 %v993, %v1077
  %1079 = vmatmul.bf16.gmra.mxu0 %v1036
  %v1080 = vpop.f32.mrf.mxu0
  %v1081 = vadd.f32 %v996, %v1080
  %v1082 = vpop.f32.mrf.mxu0
  %v1083 = vadd.f32 %v998, %v1082
  %1084 = vmatmul.bf16.gmra.mxu0 %v1039
  %v1085 = vpop.f32.mrf.mxu0
  %v1086 = vadd.f32 %v1001, %v1085
  %v1087 = vpop.f32.mrf.mxu0
  %v1088 = vadd.f32 %v1003, %v1087
  %1089 = vdwg.mxu0
  %v1090 = vld [vmem:[%s10] sm:$0x1]
  %v1092 = vperm.slane %v1090, 0
  %v1094 = vadd.f32 %v1051, %v1092
  %v1095 = vadd.f32 %v1053, %v1092
  %v1096 = vadd.f32 %v1056, %v1092
  %v1097 = vadd.f32 %v1058, %v1092
  %v1098 = vadd.f32 %v1061, %v1092
  %v1099 = vadd.f32 %v1063, %v1092
  %v1100 = vadd.f32 %v1066, %v1092
  %v1101 = vadd.f32 %v1068, %v1092
  %v1102 = vadd.f32 %v1071, %v1092
  %v1103 = vadd.f32 %v1073, %v1092
  %v1104 = vadd.f32 %v1076, %v1092
  %v1105 = vadd.f32 %v1078, %v1092
  %v1106 = vadd.f32 %v1081, %v1092
  %v1107 = vadd.f32 %v1083, %v1092
  %v1108 = vadd.f32 %v1086, %v1092
  %v1109 = vadd.f32 %v1088, %v1092
  %v1110 = vpack.c.bf16 %v1095, %v1094
  %v1111 = vpack.c.bf16 %v1097, %v1096
  %v1112 = vpack.c.bf16 %v1099, %v1098
  %v1113 = vpack.c.bf16 %v1101, %v1100
  %v1114 = vpack.c.bf16 %v1103, %v1102
  %v1115 = vpack.c.bf16 %v1105, %v1104
  %v1116 = vpack.c.bf16 %v1107, %v1106
  %v1117 = vpack.c.bf16 %v1109, %v1108
  %v1118 = vld [vmem:[%s11] sm:$0xf]
  %v1119 = vld [vmem:[%s11 + $0x4] sm:$0xf]
  %v1120 = vld [vmem:[%s11 + $0x8] sm:$0xf]
  %v1121 = vld [vmem:[%s11 + $0xc] sm:$0xf]
  %v1122 = vld [vmem:[%s12] sm:$0x1]
  %v1124 = vperm.slane %v1122, 0
  %v1130 = vunpack.c.l.b16 %v1118
  %v1131 = vunpack.c.l.b16 %v1119
  %v1132 = vunpack.c.l.b16 %v1120
  %v1133 = vunpack.c.l.b16 %v1121
  %v1134 = vpack.c.b16 %v1131, %v1130
  %v1135 = vpack.c.b16 %v1133, %v1132
  %v1139 = vsel %vm364, %v1110, 0
  %v1142 = vsel %vm364, %v1111, 0
  %v1145 = vsel %vm364, %v1112, 0
  %v1148 = vsel %vm364, %v1113, 0
  %v1151 = vsel %vm364, %v1114, 0
  %v1154 = vsel %vm364, %v1115, 0
  %v1157 = vsel %vm364, %v1116, 0
  %v1160 = vsel %vm364, %v1117, 0
  %1162 = vmatpush.bf16.msra.mxu0 0
  %1163 = vmatpush.bf16.msra.mxu0 0
  %1164 = vmatpush.bf16.msra.mxu0 0
  %1165 = vmatpush.bf16.msra.mxu0 0
  %1166 = vmatpush.bf16.msra.mxu0 0
  %1167 = vmatpush.bf16.msra.mxu0 0
  %1168 = vmatpush.bf16.msra.mxu0 %v1135
  %1169 = vmatpush.bf16.msra.mxu0 %v1134
  %1170 = vmatmul.bf16.gmra.mxu0 %v1139
  %v1171 = vpop.f32.mrf.mxu0
  %v1172 = vadd.f32 %v1124, %v1171
  %v1173 = vpop.f32.mrf.mxu0
  %v1174 = vadd.f32 %v1124, %v1173
  %1175 = vmatmul.bf16.gmra.mxu0 %v1142
  %v1176 = vpop.f32.mrf.mxu0
  %v1177 = vadd.f32 %v1124, %v1176
  %v1178 = vpop.f32.mrf.mxu0
  %v1179 = vadd.f32 %v1124, %v1178
  %1180 = vmatmul.bf16.gmra.mxu0 %v1145
  %v1181 = vpop.f32.mrf.mxu0
  %v1182 = vadd.f32 %v1124, %v1181
  %v1183 = vpop.f32.mrf.mxu0
  %v1184 = vadd.f32 %v1124, %v1183
  %1185 = vmatmul.bf16.gmra.mxu0 %v1148
  %v1186 = vpop.f32.mrf.mxu0
  %v1187 = vadd.f32 %v1124, %v1186
  %v1188 = vpop.f32.mrf.mxu0
  %v1189 = vadd.f32 %v1124, %v1188
  %1190 = vmatmul.bf16.gmra.mxu0 %v1151
  %v1191 = vpop.f32.mrf.mxu0
  %v1192 = vadd.f32 %v1124, %v1191
  %v1193 = vpop.f32.mrf.mxu0
  %v1194 = vadd.f32 %v1124, %v1193
  %1195 = vmatmul.bf16.gmra.mxu0 %v1154
  %v1196 = vpop.f32.mrf.mxu0
  %v1197 = vadd.f32 %v1124, %v1196
  %v1198 = vpop.f32.mrf.mxu0
  %v1199 = vadd.f32 %v1124, %v1198
  %1200 = vmatmul.bf16.gmra.mxu0 %v1157
  %v1201 = vpop.f32.mrf.mxu0
  %v1202 = vadd.f32 %v1124, %v1201
  %v1203 = vpop.f32.mrf.mxu0
  %v1204 = vadd.f32 %v1124, %v1203
  %1205 = vmatmul.bf16.gmra.mxu0 %v1160
  %v1206 = vpop.f32.mrf.mxu0
  %v1207 = vadd.f32 %v1124, %v1206
  %v1208 = vpop.f32.mrf.mxu0
  %v1209 = vadd.f32 %v1124, %v1208
  %1210 = vdwg.mxu0
  %v1211 = vpack.c.bf16 %v1172, %v1172
  %v1212 = vpack.c.bf16 %v1174, %v1174
  %v1213 = vpack.c.bf16 %v1177, %v1177
  %v1214 = vpack.c.bf16 %v1179, %v1179
  %v1215 = vpack.c.bf16 %v1182, %v1182
  %v1216 = vpack.c.bf16 %v1184, %v1184
  %v1217 = vpack.c.bf16 %v1187, %v1187
  %v1218 = vpack.c.bf16 %v1189, %v1189
  %v1219 = vpack.c.bf16 %v1192, %v1192
  %v1220 = vpack.c.bf16 %v1194, %v1194
  %v1221 = vpack.c.bf16 %v1197, %v1197
  %v1222 = vpack.c.bf16 %v1199, %v1199
  %v1223 = vpack.c.bf16 %v1202, %v1202
  %v1224 = vpack.c.bf16 %v1204, %v1204
  %v1225 = vpack.c.bf16 %v1207, %v1207
  %v1226 = vpack.c.bf16 %v1209, %v1209
  %v1227 = vld [vmem:[%s13] sm:$0xf]
  %v1228 = vld [vmem:[%s13 + $0x4] sm:$0xf]
  %v1229 = vld [vmem:[%s13 + $0x8] sm:$0xf]
  %v1230 = vld [vmem:[%s13 + $0xc] sm:$0xf]
  %v1235 = vunpack.c.l.b16 %v1227
  %v1236 = vunpack.c.l.b16 %v1228
  %v1237 = vunpack.c.l.b16 %v1229
  %v1238 = vunpack.c.l.b16 %v1230
  %v1239 = vpack.c.b16 %v1236, %v1235
  %v1240 = vpack.c.b16 %v1238, %v1237
  %v1249 = vunpack.c.l.b16 %v1211
  %v1250 = vunpack.c.l.b16 %v1212
  %v1251 = vunpack.c.l.b16 %v1213
  %v1252 = vunpack.c.l.b16 %v1214
  %v1253 = vunpack.c.l.b16 %v1215
  %v1254 = vunpack.c.l.b16 %v1216
  %v1255 = vunpack.c.l.b16 %v1217
  %v1256 = vunpack.c.l.b16 %v1218
  %v1257 = vpack.c.b16 %v1250, %v1249
  %v1258 = vpack.c.b16 %v1252, %v1251
  %v1259 = vpack.c.b16 %v1254, %v1253
  %v1260 = vpack.c.b16 %v1256, %v1255
  %v1262 = vsel %vm364, %v1239, 0
  %v1265 = vsel %vm364, %v1240, 0
  %v1268 = vsel %vm364, %v1257, 0
  %v1271 = vsel %vm364, %v1258, 0
  %v1274 = vsel %vm364, %v1259, 0
  %v1277 = vsel %vm364, %v1260, 0
  %1279 = vmatpush.bf16.xpose.msra.mxu0 0
  %1280 = vmatpush.bf16.xpose.msra.mxu0 0
  %1281 = vmatpush.bf16.xpose.msra.mxu0 0
  %1282 = vmatpush.bf16.xpose.msra.mxu0 0
  %1283 = vmatpush.bf16.xpose.msra.mxu0 %v1277
  %1284 = vmatpush.bf16.xpose.msra.mxu0 %v1274
  %1285 = vmatpush.bf16.xpose.msra.mxu0 %v1271
  %1286 = vmatpush.bf16.xpose.msra.mxu0 %v1268
  %1287 = vmatmul.bf16.gmra.mxu0 %v1262
  %v1288 = vpop.f32.mrf.mxu0
  %v1289 = vadd.f32 0.0, %v1288
  %v1290 = vpop.f32.mrf.mxu0
  %v1291 = vadd.f32 0.0, %v1290
  %1292 = vmatmul.bf16.gmra.mxu0 %v1265
  %v1293 = vpop.f32.mrf.mxu0
  %v1294 = vadd.f32 0.0, %v1293
  %v1295 = vpop.f32.mrf.mxu0
  %v1296 = vadd.f32 0.0, %v1295
  %1297 = vdwg.mxu0
  %v1298 = vmul.f32 %v1289, 0.17677669
  %v1299 = vmul.f32 %v1291, 0.17677669
  %v1300 = vmul.f32 %v1294, 0.17677669
  %v1301 = vmul.f32 %v1296, 0.17677669
  %vm1302 = vcmask 523264
  %v1303 = vsel %vm1302, %v1298, -inf
  %1304 = vmax.xlane.f32.xlu0 %v1303
  %v1305 = vpop.xlane.xlu0 %1304
  %v1306 = vsel %vm1302, %v1299, -inf
  %1307 = vmax.xlane.f32.xlu0 %v1306
  %v1308 = vpop.xlane.xlu0 %1307
  %v1309 = vsel %vm1302, %v1300, -inf
  %1310 = vmax.xlane.f32.xlu0 %v1309
  %v1311 = vpop.xlane.xlu0 %1310
  %v1312 = vsel %vm1302, %v1301, -inf
  %1313 = vmax.xlane.f32.xlu0 %v1312
  %v1314 = vpop.xlane.xlu0 %1313
  %v1315 = vsub.f32 %v1298, %v1305
  %v1316 = vsub.f32 %v1299, %v1308
  %v1317 = vsub.f32 %v1300, %v1311
  %v1318 = vsub.f32 %v1301, %v1314
  %v1319 = vmul.f32 %v1315, 1.442695
  %v1320 = vpow.pop %v1319
  %v1321 = vmul.f32 %v1316, 1.442695
  %v1322 = vpow.pop %v1321
  %v1323 = vmul.f32 %v1317, 1.442695
  %v1324 = vpow.pop %v1323
  %v1325 = vmul.f32 %v1318, 1.442695
  %v1326 = vpow.pop %v1325
  %v1327 = vsel %vm1302, %v1320, 0.0
  %1328 = vadd.xlane.f32.xlu0 %v1327
  %v1329 = vpop.xlane.xlu0 %1328
  %v1330 = vsel %vm1302, %v1322, 0.0
  %1331 = vadd.xlane.f32.xlu0 %v1330
  %v1332 = vpop.xlane.xlu0 %1331
  %v1333 = vsel %vm1302, %v1324, 0.0
  %1334 = vadd.xlane.f32.xlu0 %v1333
  %v1335 = vpop.xlane.xlu0 %1334
  %v1336 = vsel %vm1302, %v1326, 0.0
  %1337 = vadd.xlane.f32.xlu0 %v1336
  %v1338 = vpop.xlane.xlu0 %1337
  %v1339 = vrcp.pop %v1329
  %v1340 = vmul.f32 %v1329, %v1339
  %v1341 = vsub.f32 1.0, %v1340
  %v1342 = vmul.f32 %v1339, %v1341
  %v1343 = vadd.f32 %v1339, %v1342
  %vm1344 = vweird.f32 %v1329
  %vm1345 = vweird.f32 %v1339
  %vm1346 = vmor %vm1344, %vm1345
  %v1347 = vsel %vm1346, %v1339, %v1343
  %v1348 = vand.u32 2147483647, %v1329
  %vm1349 = vcmp.eq.f32.partialorder %v1348, 8.507059e+37
  %v1350 = vand.u32 %v1329, 2147483648
  %v1351 = vor.u32 1.1754944e-38, %v1350
  %v1352 = vsel %vm1349, %v1351, %v1347
  %v1353 = vmul.f32 %v1320, %v1352
  %v1354 = vrcp.pop %v1332
  %v1355 = vmul.f32 %v1332, %v1354
  %v1356 = vsub.f32 1.0, %v1355
  %v1357 = vmul.f32 %v1354, %v1356
  %v1358 = vadd.f32 %v1354, %v1357
  %vm1359 = vweird.f32 %v1332
  %vm1360 = vweird.f32 %v1354
  %vm1361 = vmor %vm1359, %vm1360
  %v1362 = vsel %vm1361, %v1354, %v1358
  %v1363 = vand.u32 2147483647, %v1332
  %vm1364 = vcmp.eq.f32.partialorder %v1363, 8.507059e+37
  %v1365 = vand.u32 %v1332, 2147483648
  %v1366 = vor.u32 1.1754944e-38, %v1365
  %v1367 = vsel %vm1364, %v1366, %v1362
  %v1368 = vmul.f32 %v1322, %v1367
  %v1369 = vrcp.pop %v1335
  %v1370 = vmul.f32 %v1335, %v1369
  %v1371 = vsub.f32 1.0, %v1370
  %v1372 = vmul.f32 %v1369, %v1371
  %v1373 = vadd.f32 %v1369, %v1372
  %vm1374 = vweird.f32 %v1335
  %vm1375 = vweird.f32 %v1369
  %vm1376 = vmor %vm1374, %vm1375
  %v1377 = vsel %vm1376, %v1369, %v1373
  %v1378 = vand.u32 2147483647, %v1335
  %vm1379 = vcmp.eq.f32.partialorder %v1378, 8.507059e+37
  %v1380 = vand.u32 %v1335, 2147483648
  %v1381 = vor.u32 1.1754944e-38, %v1380
  %v1382 = vsel %vm1379, %v1381, %v1377
  %v1383 = vmul.f32 %v1324, %v1382
  %v1384 = vrcp.pop %v1338
  %v1385 = vmul.f32 %v1338, %v1384
  %v1386 = vsub.f32 1.0, %v1385
  %v1387 = vmul.f32 %v1384, %v1386
  %v1388 = vadd.f32 %v1384, %v1387
  %vm1389 = vweird.f32 %v1338
  %vm1390 = vweird.f32 %v1384
  %vm1391 = vmor %vm1389, %vm1390
  %v1392 = vsel %vm1391, %v1384, %v1388
  %v1393 = vand.u32 2147483647, %v1338
  %vm1394 = vcmp.eq.f32.partialorder %v1393, 8.507059e+37
  %v1395 = vand.u32 %v1338, 2147483648
  %v1396 = vor.u32 1.1754944e-38, %v1395
  %v1397 = vsel %vm1394, %v1396, %v1392
  %v1398 = vmul.f32 %v1326, %v1397
  %v1399 = vpack.c.bf16 %v1368, %v1353
  %v1400 = vpack.c.bf16 %v1398, %v1383
  %v1406 = vsel %vm1302, %v1399, 0
  %v1409 = vsel %vm1302, %v1400, 0
  %1411 = vmatpush.bf16.msra.mxu0 0
  %1412 = vmatpush.bf16.msra.mxu0 0
  %1413 = vmatpush.bf16.msra.mxu0 0
  %1414 = vmatpush.bf16.msra.mxu0 0
  %1415 = vmatpush.bf16.msra.mxu0 %v1260
  %1416 = vmatpush.bf16.msra.mxu0 %v1259
  %1417 = vmatpush.bf16.msra.mxu0 %v1258
  %1418 = vmatpush.bf16.msra.mxu0 %v1257
  %1419 = vmatmul.bf16.gmra.mxu0 %v1406
  %v1420 = vpop.f32.mrf.mxu0
  %v1421 = vadd.f32 0.0, %v1420
  %v1422 = vpop.f32.mrf.mxu0
  %v1423 = vadd.f32 0.0, %v1422
  %1424 = vmatmul.bf16.gmra.mxu0 %v1409
  %v1425 = vpop.f32.mrf.mxu0
  %v1426 = vadd.f32 0.0, %v1425
  %v1427 = vpop.f32.mrf.mxu0
  %v1428 = vadd.f32 0.0, %v1427
  %1429 = vdwg.mxu0
  %1430 = vst.msk [vmem:[%s14] sm:$0xff] %vm364, %v1421
  %1431 = vst.msk [vmem:[%s14 + $0x8] sm:$0xff] %vm364, %v1423
  %1432 = vst.msk [vmem:[%s14 + $0x10] sm:$0xff] %vm364, %v1426
  %1433 = vst.msk [vmem:[%s14 + $0x18] sm:$0xff] %vm364, %v1428
  %v1442 = vunpack.c.l.b16 %v1219
  %v1443 = vunpack.c.l.b16 %v1220
  %v1444 = vunpack.c.l.b16 %v1221
  %v1445 = vunpack.c.l.b16 %v1222
  %v1446 = vunpack.c.l.b16 %v1223
  %v1447 = vunpack.c.l.b16 %v1224
  %v1448 = vunpack.c.l.b16 %v1225
  %v1449 = vunpack.c.l.b16 %v1226
  %v1450 = vpack.c.b16 %v1443, %v1442
  %v1451 = vpack.c.b16 %v1445, %v1444
  %v1452 = vpack.c.b16 %v1447, %v1446
  %v1453 = vpack.c.b16 %v1449, %v1448
  %v1455 = vsel %vm364, %v1450, 0
  %v1458 = vsel %vm364, %v1451, 0
  %v1461 = vsel %vm364, %v1452, 0
  %v1464 = vsel %vm364, %v1453, 0
  %1466 = vmatpush.bf16.xpose.msra.mxu0 0
  %1467 = vmatpush.bf16.xpose.msra.mxu0 0
  %1468 = vmatpush.bf16.xpose.msra.mxu0 0
  %1469 = vmatpush.bf16.xpose.msra.mxu0 0
  %1470 = vmatpush.bf16.xpose.msra.mxu0 %v1464
  %1471 = vmatpush.bf16.xpose.msra.mxu0 %v1461
  %1472 = vmatpush.bf16.xpose.msra.mxu0 %v1458
  %1473 = vmatpush.bf16.xpose.msra.mxu0 %v1455
  %1474 = vmatmul.bf16.gmra.mxu0 %v1262
  %v1475 = vpop.f32.mrf.mxu0
  %v1476 = vadd.f32 0.0, %v1475
  %v1477 = vpop.f32.mrf.mxu0
  %v1478 = vadd.f32 0.0, %v1477
  %1479 = vmatmul.bf16.gmra.mxu0 %v1265
  %v1480 = vpop.f32.mrf.mxu0
  %v1481 = vadd.f32 0.0, %v1480
  %v1482 = vpop.f32.mrf.mxu0
  %v1483 = vadd.f32 0.0, %v1482
  %1484 = vdwg.mxu0
  %v1485 = vmul.f32 %v1476, 0.17677669
  %v1486 = vmul.f32 %v1478, 0.17677669
  %v1487 = vmul.f32 %v1481, 0.17677669
  %v1488 = vmul.f32 %v1483, 0.17677669
  %v1489 = vsel %vm1302, %v1485, -inf
  %1490 = vmax.xlane.f32.xlu0 %v1489
  %v1491 = vpop.xlane.xlu0 %1490
  %v1492 = vsel %vm1302, %v1486, -inf
  %1493 = vmax.xlane.f32.xlu0 %v1492
  %v1494 = vpop.xlane.xlu0 %1493
  %v1495 = vsel %vm1302, %v1487, -inf
  %1496 = vmax.xlane.f32.xlu0 %v1495
  %v1497 = vpop.xlane.xlu0 %1496
  %v1498 = vsel %vm1302, %v1488, -inf
  %1499 = vmax.xlane.f32.xlu0 %v1498
  %v1500 = vpop.xlane.xlu0 %1499
  %v1501 = vsub.f32 %v1485, %v1491
  %v1502 = vsub.f32 %v1486, %v1494
  %v1503 = vsub.f32 %v1487, %v1497
  %v1504 = vsub.f32 %v1488, %v1500
  %v1505 = vmul.f32 %v1501, 1.442695
  %v1506 = vpow.pop %v1505
  %v1507 = vmul.f32 %v1502, 1.442695
  %v1508 = vpow.pop %v1507
  %v1509 = vmul.f32 %v1503, 1.442695
  %v1510 = vpow.pop %v1509
  %v1511 = vmul.f32 %v1504, 1.442695
  %v1512 = vpow.pop %v1511
  %v1513 = vsel %vm1302, %v1506, 0.0
  %1514 = vadd.xlane.f32.xlu0 %v1513
  %v1515 = vpop.xlane.xlu0 %1514
  %v1516 = vsel %vm1302, %v1508, 0.0
  %1517 = vadd.xlane.f32.xlu0 %v1516
  %v1518 = vpop.xlane.xlu0 %1517
  %v1519 = vsel %vm1302, %v1510, 0.0
  %1520 = vadd.xlane.f32.xlu0 %v1519
  %v1521 = vpop.xlane.xlu0 %1520
  %v1522 = vsel %vm1302, %v1512, 0.0
  %1523 = vadd.xlane.f32.xlu0 %v1522
  %v1524 = vpop.xlane.xlu0 %1523
  %v1525 = vrcp.pop %v1515
  %v1526 = vmul.f32 %v1515, %v1525
  %v1527 = vsub.f32 1.0, %v1526
  %v1528 = vmul.f32 %v1525, %v1527
  %v1529 = vadd.f32 %v1525, %v1528
  %vm1530 = vweird.f32 %v1515
  %vm1531 = vweird.f32 %v1525
  %vm1532 = vmor %vm1530, %vm1531
  %v1533 = vsel %vm1532, %v1525, %v1529
  %v1534 = vand.u32 2147483647, %v1515
  %vm1535 = vcmp.eq.f32.partialorder %v1534, 8.507059e+37
  %v1536 = vand.u32 %v1515, 2147483648
  %v1537 = vor.u32 1.1754944e-38, %v1536
  %v1538 = vsel %vm1535, %v1537, %v1533
  %v1539 = vmul.f32 %v1506, %v1538
  %v1540 = vrcp.pop %v1518
  %v1541 = vmul.f32 %v1518, %v1540
  %v1542 = vsub.f32 1.0, %v1541
  %v1543 = vmul.f32 %v1540, %v1542
  %v1544 = vadd.f32 %v1540, %v1543
  %vm1545 = vweird.f32 %v1518
  %vm1546 = vweird.f32 %v1540
  %vm1547 = vmor %vm1545, %vm1546
  %v1548 = vsel %vm1547, %v1540, %v1544
  %v1549 = vand.u32 2147483647, %v1518
  %vm1550 = vcmp.eq.f32.partialorder %v1549, 8.507059e+37
  %v1551 = vand.u32 %v1518, 2147483648
  %v1552 = vor.u32 1.1754944e-38, %v1551
  %v1553 = vsel %vm1550, %v1552, %v1548
  %v1554 = vmul.f32 %v1508, %v1553
  %v1555 = vrcp.pop %v1521
  %v1556 = vmul.f32 %v1521, %v1555
  %v1557 = vsub.f32 1.0, %v1556
  %v1558 = vmul.f32 %v1555, %v1557
  %v1559 = vadd.f32 %v1555, %v1558
  %vm1560 = vweird.f32 %v1521
  %vm1561 = vweird.f32 %v1555
  %vm1562 = vmor %vm1560, %vm1561
  %v1563 = vsel %vm1562, %v1555, %v1559
  %v1564 = vand.u32 2147483647, %v1521
  %vm1565 = vcmp.eq.f32.partialorder %v1564, 8.507059e+37
  %v1566 = vand.u32 %v1521, 2147483648
  %v1567 = vor.u32 1.1754944e-38, %v1566
  %v1568 = vsel %vm1565, %v1567, %v1563
  %v1569 = vmul.f32 %v1510, %v1568
  %v1570 = vrcp.pop %v1524
  %v1571 = vmul.f32 %v1524, %v1570
  %v1572 = vsub.f32 1.0, %v1571
  %v1573 = vmul.f32 %v1570, %v1572
  %v1574 = vadd.f32 %v1570, %v1573
  %vm1575 = vweird.f32 %v1524
  %vm1576 = vweird.f32 %v1570
  %vm1577 = vmor %vm1575, %vm1576
  %v1578 = vsel %vm1577, %v1570, %v1574
  %v1579 = vand.u32 2147483647, %v1524
  %vm1580 = vcmp.eq.f32.partialorder %v1579, 8.507059e+37
  %v1581 = vand.u32 %v1524, 2147483648
  %v1582 = vor.u32 1.1754944e-38, %v1581
  %v1583 = vsel %vm1580, %v1582, %v1578
  %v1584 = vmul.f32 %v1512, %v1583
  %v1585 = vpack.c.bf16 %v1554, %v1539
  %v1586 = vpack.c.bf16 %v1584, %v1569
  %v1592 = vsel %vm1302, %v1585, 0
  %v1595 = vsel %vm1302, %v1586, 0
  %1597 = vmatpush.bf16.msra.mxu0 0
  %1598 = vmatpush.bf16.msra.mxu0 0
  %1599 = vmatpush.bf16.msra.mxu0 0
  %1600 = vmatpush.bf16.msra.mxu0 0
  %1601 = vmatpush.bf16.msra.mxu0 %v1453
  %1602 = vmatpush.bf16.msra.mxu0 %v1452
  %1603 = vmatpush.bf16.msra.mxu0 %v1451
  %1604 = vmatpush.bf16.msra.mxu0 %v1450
  %1605 = vmatmul.bf16.gmra.mxu0 %v1592
  %v1606 = vpop.f32.mrf.mxu0
  %v1607 = vadd.f32 0.0, %v1606
  %v1608 = vpop.f32.mrf.mxu0
  %v1609 = vadd.f32 0.0, %v1608
  %1610 = vmatmul.bf16.gmra.mxu0 %v1595
  %v1611 = vpop.f32.mrf.mxu0
  %v1612 = vadd.f32 0.0, %v1611
  %v1613 = vpop.f32.mrf.mxu0
  %v1614 = vadd.f32 0.0, %v1613
  %1615 = vdwg.mxu0
  %s1616 = scalar_lea.vmem %s14, 32
  %1617 = vst.msk [vmem:[%s1616] sm:$0xff] %vm364, %v1607
  %1618 = vst.msk [vmem:[%s1616 + $0x8] sm:$0xff] %vm364, %v1609
  %1619 = vst.msk [vmem:[%s1616 + $0x10] sm:$0xff] %vm364, %v1612
  %1620 = vst.msk [vmem:[%s1616 + $0x18] sm:$0xff] %vm364, %v1614
  // Predicated region
  $region58: #{causal_forward.1} parent=0 // pred_check
    _
  $region59: #{causal_forward.1} parent=0 // pred_check_branch
    %1622 = sbr.rel (0) target = $region61
  $region60: #{causal_forward.1} parent=0 // pred_region
    _
  $region61: #{causal_forward.1} parent=0 // pred_fallthru
    _
  // Predicated region
  $region62: #{causal_forward.1} parent=0 // pred_check
    _
  $region63: #{causal_forward.1} parent=0 // pred_check_branch
    %1624 = sbr.rel (0) target = $region65
  $region64: #{causal_forward.1} parent=0 // pred_region
    _
  $region65: #{causal_forward.1} parent=0 // pred_fallthru
    _

</llo_original>
